<compile_context>
chip_gen: v6e
topology: v6e:2x2x1
jax: 0.10.0
libtpu: 0.0.40
codegen_flags: <defaults>
</compile_context>

<pallas_src>
from functools import partial

import jax
import jax.numpy as jnp
from jax import lax
from jax.experimental import pallas as pl
from jax.experimental.pallas import tpu as pltpu


# ---------------------------------------------------------------------------
# helpers
# ---------------------------------------------------------------------------
def _pick_tile(n, target, align):
    """Largest tile <= target that divides n and is a multiple of `align`,
    falling back to the full dimension (always a legal block)."""
    if n <= target:
        return n
    t = (target // align) * align
    while t >= align:
        if n % t == 0:
            return t
        t -= align
    return n


# ---------------------------------------------------------------------------
# Tiled linear:  y = x @ w + b
# ---------------------------------------------------------------------------
def _linear_kernel(x_ref, w_ref, b_ref, o_ref, acc_ref):
    k_idx = pl.program_id(2)

    @pl.when(k_idx == 0)
    def _init():
        acc_ref[...] = jnp.zeros(acc_ref.shape, acc_ref.dtype)

    acc_ref[...] += jnp.dot(
        x_ref[...], w_ref[...], preferred_element_type=jnp.float32
    )

    @pl.when(k_idx == pl.num_programs(2) - 1)
    def _finalize():
        # bias add fused on the already-resident accumulator tile
        o_ref[...] = (acc_ref[...] + b_ref[...].astype(jnp.float32)).astype(o_ref.dtype)


def linear_pallas(x, w, b, *, tm_target=256, tn_target=512, tk_target=256):
    """x: (M, K) @ w: (K, N) + b: (N,) -> (M, N), tiled + pipelined."""
    M, K = x.shape
    N = w.shape[1]
    tm = _pick_tile(M, tm_target, 8)
    tn = _pick_tile(N, tn_target, 128)
    tk = _pick_tile(K, tk_target, 128)
    grid = (M // tm, N // tn, K // tk)

    return pl.pallas_call(
        _linear_kernel,
        out_shape=jax.ShapeDtypeStruct((M, N), x.dtype),
        grid=grid,
        in_specs=[
            pl.BlockSpec((tm, tk), lambda i, j, k: (i, k)),
            pl.BlockSpec((tk, tn), lambda i, j, k: (k, j)),
            pl.BlockSpec((1, tn), lambda i, j, k: (0, j)),
        ],
        out_specs=pl.BlockSpec((tm, tn), lambda i, j, k: (i, j)),
        scratch_shapes=[pltpu.VMEM((tm, tn), jnp.float32)],
        compiler_params=pltpu.CompilerParams(
            dimension_semantics=("parallel", "parallel", "arbitrary")
        ),
    )(x, w, b.reshape(1, N))


# ---------------------------------------------------------------------------
# Flash-style attention core (all heads per grid step, heads folded on lanes)
# ---------------------------------------------------------------------------
def _flash_attn_kernel(q_ref, k_ref, v_ref, o_ref, m_ref, l_ref, acc_ref,
                       *, num_heads, head_dim, scale):
    # q_ref: (1, tq, dim)   k_ref/v_ref: (1, tkv, dim)   o_ref: (1, tq, dim)
    # m_ref/l_ref: (nh, tq, 1) f32     acc_ref: (tq, dim) f32
    kv_idx = pl.program_id(2)

    @pl.when(kv_idx == 0)
    def _init():
        m_ref[...] = jnp.full(m_ref.shape, -jnp.inf, dtype=m_ref.dtype)
        l_ref[...] = jnp.zeros(l_ref.shape, l_ref.dtype)
        acc_ref[...] = jnp.zeros(acc_ref.shape, acc_ref.dtype)

    q_all = q_ref[0]  # (tq, dim)
    k_all = k_ref[0]  # (tkv, dim)
    v_all = v_ref[0]  # (tkv, dim)

    # Scale q once (O(tq*dim)) instead of scaling the (tq, tkv) scores.
    q_all = (q_all.astype(jnp.float32) * scale).astype(q_all.dtype)

    for h in range(num_heads):
        sl = slice(h * head_dim, (h + 1) * head_dim)
        qh = q_all[:, sl]
        kh = k_all[:, sl]
        vh = v_all[:, sl]

        # q k^T without materializing a transpose of k: contract last dims.
        s = lax.dot_general(
            qh, kh, (((1,), (1,)), ((), ())),
            preferred_element_type=jnp.float32,
        )  # (tq, tkv), f32

        m_prev = m_ref[h]   # (tq, 1)
        l_prev = l_ref[h]   # (tq, 1)
        m_new = jnp.maximum(m_prev, jnp.max(s, axis=-1, keepdims=True))
        alpha = jnp.exp(m_prev - m_new)
        p = jnp.exp(s - m_new)                       # f32 softmax math
        l_ref[h] = alpha * l_prev + jnp.sum(p, axis=-1, keepdims=True)
        acc_ref[:, sl] = alpha * acc_ref[:, sl] + jnp.dot(
            p.astype(vh.dtype), vh, preferred_element_type=jnp.float32
        )
        m_ref[h] = m_new

    @pl.when(kv_idx == pl.num_programs(2) - 1)
    def _finalize():
        parts = []
        for h in range(num_heads):
            sl = slice(h * head_dim, (h + 1) * head_dim)
            inv_l = pl.reciprocal(l_ref[h], approx=True)     # EUP, ~free
            parts.append(acc_ref[:, sl] * inv_l)
        # one lane-dense (tq, dim) store
        o_ref[0] = jnp.concatenate(parts, axis=-1).astype(o_ref.dtype)


def flash_attention_pallas(qkv3, num_heads, out_dim, *, tq_target=128, tkv_target=128):
    """qkv3: (B, S, 3*dim) fused QKV activations -> (B, S, dim) attention output.

    Heads stay folded in the last (lane) dim; q/k/v are read straight out of the
    fused QKV tensor via index_maps, so no transposes ever hit HBM.
    tq/tkv targets: 128 is safe on v5e/v7x; raise toward 256-512 on v6e (128 MiB VMEM).
    """
    B, S, three_dim = qkv3.shape
    dim = out_dim
    head_dim = dim // num_heads
    scale = head_dim ** (-0.5)  # F.scaled_dot_product_attention default

    tq = _pick_tile(S, tq_target, 8)
    tkv = _pick_tile(S, tkv_target, 128)
    grid = (B, S // tq, S // tkv)

    kernel = partial(_flash_attn_kernel, num_heads=num_heads,
                     head_dim=head_dim, scale=scale)

    if dim % 128 == 0:
        # Lane-aligned: select the q/k/v planes via the last-dim block index.
        operands = (qkv3, qkv3, qkv3)
        q_map = lambda b, qi, ki: (b, qi, 0)
        k_map = lambda b, qi, ki: (b, ki, 1)
        v_map = lambda b, qi, ki: (b, ki, 2)
    else:
        # Fallback for unaligned dims: slice planes once in the wrapper so each
        # block's last dim equals the full array dim (always a legal block).
        operands = (qkv3[:, :, 0:dim], qkv3[:, :, dim:2 * dim], qkv3[:, :, 2 * dim:3 * dim])
        q_map = lambda b, qi, ki: (b, qi, 0)
        k_map = lambda b, qi, ki: (b, ki, 0)
        v_map = lambda b, qi, ki: (b, ki, 0)

    return pl.pallas_call(
        kernel,
        out_shape=jax.ShapeDtypeStruct((B, S, dim), qkv3.dtype),
        grid=grid,
        in_specs=[
            pl.BlockSpec((1, tq, dim), q_map),
            pl.BlockSpec((1, tkv, dim), k_map),
            pl.BlockSpec((1, tkv, dim), v_map),
        ],
        out_specs=pl.BlockSpec((1, tq, dim), lambda b, qi, ki: (b, qi, 0)),
        scratch_shapes=[
            pltpu.VMEM((num_heads, tq, 1), jnp.float32),   # running max m
            pltpu.VMEM((num_heads, tq, 1), jnp.float32),   # running denom l
            pltpu.VMEM((tq, dim), jnp.float32),            # output accumulator
        ],
        compiler_params=pltpu.CompilerParams(
            dimension_semantics=("parallel", "parallel", "arbitrary")
        ),
    )(*operands)


# ---------------------------------------------------------------------------
# Module forward
# ---------------------------------------------------------------------------
def attention_forward(x, params, num_heads, *, compute_dtype=None):
    B, H, W, dim = x.shape
    S = H * W
    cdt = compute_dtype if compute_dtype is not None else x.dtype

    x_flat = x.reshape(B * S, dim).astype(cdt)
    w_qkv = params["w_qkv"].astype(cdt)
    b_qkv = params["b_qkv"].astype(cdt)
    w_proj = params["w_proj"].astype(cdt)
    b_proj = params["b_proj"].astype(cdt)

    # qkv projection: (B*S, dim) -> (B*S, 3*dim)
    qkv = linear_pallas(x_flat, w_qkv, b_qkv)
    qkv3 = qkv.reshape(B, S, 3 * dim)                 # free reshape, no transpose

    # flash attention over all heads, output already in (B, S, dim) token layout
    attn = flash_attention_pallas(qkv3, num_heads, dim)

    # output projection
    out = linear_pallas(attn.reshape(B * S, dim), w_proj, b_proj)
    return out.reshape(B, H, W, dim).astype(x.dtype)


# ---------------------------------------------------------------------------
# Pure-JAX reference (mirrors the PyTorch module)
# ---------------------------------------------------------------------------
def attention_reference(x, params, num_heads):
    B, H, W, dim = x.shape
    S = H * W
    head_dim = dim // num_heads
    scale = head_dim ** (-0.5)

    qkv = x.reshape(B * S, dim) @ params["w_qkv"] + params["b_qkv"]
    qkv = qkv.reshape(B, S, 3, num_heads, head_dim)
    qkv = jnp.transpose(qkv, (2, 0, 3, 1, 4))
    q, k, v = qkv[0], qkv[1], qkv[2]  # (B, nh, S, hd)

    s = jnp.einsum("bhqd,bhkd->bhqk", q, k) * scale
    p = jax.nn.softmax(s, axis=-1)
    o = jnp.einsum("bhqk,bhkd->bhqd", p, v)
    o = jnp.transpose(o, (0, 2, 1, 3)).reshape(B * S, dim)
    out = o @ params["w_proj"] + params["b_proj"]
    return out.reshape(B, H, W, dim)


# ---------------------------------------------------------------------------
# Main
# ---------------------------------------------------------------------------
if __name__ == "__main__":
    # Lane-aligned small config: head_dim=128 (lane-dense), S=256 so the
    # flash q/kv grid axes actually have multiple blocks (exercises the
    # online-softmax accumulator path).
    B, H, W, dim = 2, 16, 16, 256
    num_heads = 2

    key = jax.random.PRNGKey(0)
    k_x, k_wqkv, k_bqkv, k_wp, k_bp = jax.random.split(key, 5)

    x = jax.random.normal(k_x, (B, H, W, dim), dtype=jnp.float32)

    # Deterministic synthetic parameters, stored as (in, out) so y = x @ W + b.
    params = {
        "w_qkv": jax.random.normal(k_wqkv, (dim, 3 * dim), dtype=jnp.float32) * 0.05,
        "b_qkv": jax.random.normal(k_bqkv, (3 * dim,), dtype=jnp.float32) * 0.01,
        "w_proj": jax.random.normal(k_wp, (dim, dim), dtype=jnp.float32) * 0.05,
        "b_proj": jax.random.normal(k_bp, (dim,), dtype=jnp.float32) * 0.01,
    }

    ref = attention_reference(x, params, num_heads)

    # f32 path. Tolerance accounts for pl.reciprocal(approx=True) in the softmax
    # normalization and TPU f32 matmul pass differences vs the XLA reference.
    out = attention_forward(x, params, num_heads)
    out = jax.block_until_ready(out)
    assert out.shape == (B, H, W, dim), out.shape
    assert jnp.allclose(out, ref, atol=2e-2, rtol=2e-2), "f32 mismatch vs reference"

    # bf16 MXU path (f32 accumulation / softmax), loose tolerance for bf16 rounding.
    out_bf16 = attention_forward(x, params, num_heads, compute_dtype=jnp.bfloat16)
    out_bf16 = jax.block_until_ready(out_bf16)
    assert out_bf16.shape == (B, H, W, dim)
    assert jnp.allclose(out_bf16.astype(jnp.float32), ref, atol=1e-1, rtol=1e-1), \
        "bf16 mismatch vs reference"

    print("KERNEL_OK")
</pallas_src>

<mosaic_0001>
module attributes {stable_mosaic.version = 11 : i64} {
  func.func @_linear_kernel(%arg0: i32, %arg1: i32, %arg2: i32, %arg3: memref<256x256xf32, #tpu.memory_space<vmem>>, %arg4: memref<256x384xf32, #tpu.memory_space<vmem>>, %arg5: memref<1x384xf32, #tpu.memory_space<vmem>>, %arg6: memref<256x384xf32, #tpu.memory_space<vmem>>, %arg7: memref<256x384xf32, #tpu.memory_space<vmem>>) attributes {dimension_semantics = [#tpu.dimension_semantics<parallel>, #tpu.dimension_semantics<parallel>, #tpu.dimension_semantics<arbitrary>], iteration_bounds = array<i64: 2, 2, 1>, scalar_prefetch = 0 : i64, scratch_operands = 1 : i64, tpu.core_type = #tpu.core_type<tc>, window_params = [{transform_indices = @transform_0, window_bounds = array<i64: 256, 256>}, {transform_indices = @transform_1, window_bounds = array<i64: 256, 384>}, {transform_indices = @transform_2, window_bounds = array<i64: 1, 384>}, {transform_indices = @transform_3, window_bounds = array<i64: 256, 384>}]} {
    %c0_i32 = arith.constant 0 : i32
    %0 = arith.cmpi eq, %arg2, %c0_i32 : i32
    %1 = arith.extui %0 : i1 to i32
    %c0_i32_0 = arith.constant 0 : i32
    %2 = arith.cmpi ne, %1, %c0_i32_0 : i32
    scf.if %2 {
      %cst_10 = arith.constant 0.000000e+00 : f32
      %12 = vector.broadcast %cst_10 : f32 to vector<256x384xf32>
      %c0_11 = arith.constant 0 : index
      %c0_12 = arith.constant 0 : index
      %13 = vector.load %arg7[%c0_11, %c0_12] : memref<256x384xf32, #tpu.memory_space<vmem>>, vector<256x384xf32>
      tpu.vector_store %arg7[%c0_11, %c0_12], %12 {strides = array<i32>} : memref<256x384xf32, #tpu.memory_space<vmem>>, vector<256x384xf32>,
    } else {
    }
    %c0 = arith.constant 0 : index
    %c0_1 = arith.constant 0 : index
    %3 = vector.load %arg7[%c0, %c0_1] : memref<256x384xf32, #tpu.memory_space<vmem>>, vector<256x384xf32>
    %c0_2 = arith.constant 0 : index
    %c0_3 = arith.constant 0 : index
    %4 = vector.load %arg3[%c0_2, %c0_3] : memref<256x256xf32, #tpu.memory_space<vmem>>, vector<256x256xf32>
    %c0_4 = arith.constant 0 : index
    %c0_5 = arith.constant 0 : index
    %5 = vector.load %arg4[%c0_4, %c0_5] : memref<256x384xf32, #tpu.memory_space<vmem>>, vector<256x384xf32>
    %cst = arith.constant dense<0.000000e+00> : vector<256x384xf32>
    %6 = tpu.matmul %4, %5, %cst {dimension_numbers = #tpu.dot_dimension_numbers<[1], [0], [0], [1], [0, 0, 1, 1], [], []>} : vector<256x256xf32>, vector<256x384xf32>, vector<256x384xf32> -> vector<256x384xf32>
    %7 = arith.addf %3, %6 : vector<256x384xf32>
    %c0_6 = arith.constant 0 : index
    %c0_7 = arith.constant 0 : index
    %8 = vector.load %arg7[%c0_6, %c0_7] : memref<256x384xf32, #tpu.memory_space<vmem>>, vector<256x384xf32>
    tpu.vector_store %arg7[%c0_6, %c0_7], %7 {strides = array<i32>} : memref<256x384xf32, #tpu.memory_space<vmem>>, vector<256x384xf32>,
    %c0_i32_8 = arith.constant 0 : i32
    %9 = arith.cmpi eq, %arg2, %c0_i32_8 : i32
    %10 = arith.extui %9 : i1 to i32
    %c0_i32_9 = arith.constant 0 : i32
    %11 = arith.cmpi ne, %10, %c0_i32_9 : i32
    scf.if %11 {
      %c0_10 = arith.constant 0 : index
      %c0_11 = arith.constant 0 : index
      %12 = vector.load %arg7[%c0_10, %c0_11] : memref<256x384xf32, #tpu.memory_space<vmem>>, vector<256x384xf32>
      %c0_12 = arith.constant 0 : index
      %c0_13 = arith.constant 0 : index
      %13 = vector.load %arg5[%c0_12, %c0_13] : memref<1x384xf32, #tpu.memory_space<vmem>>, vector<1x384xf32>
      %14 = vector.broadcast %13 : vector<1x384xf32> to vector<256x384xf32>
      %15 = arith.addf %12, %14 : vector<256x384xf32>
      %c0_14 = arith.constant 0 : index
      %c0_15 = arith.constant 0 : index
      %16 = vector.load %arg6[%c0_14, %c0_15] : memref<256x384xf32, #tpu.memory_space<vmem>>, vector<256x384xf32>
      tpu.vector_store %arg6[%c0_14, %c0_15], %15 {strides = array<i32>} : memref<256x384xf32, #tpu.memory_space<vmem>>, vector<256x384xf32>,
    } else {
    }
    return
  }
  func.func @transform_0(%arg0: i32, %arg1: i32, %arg2: i32) -> (i32, i32) {
    %c0_i32 = arith.constant 0 : i32
    return %arg0, %arg2 : i32, i32
  }
  func.func @transform_1(%arg0: i32, %arg1: i32, %arg2: i32) -> (i32, i32) {
    %c0_i32 = arith.constant 0 : i32
    return %arg2, %arg1 : i32, i32
  }
  func.func @transform_2(%arg0: i32, %arg1: i32, %arg2: i32) -> (i32, i32) {
    %c0_i32 = arith.constant 0 : i32
    %c0_i32_0 = arith.constant 0 : i32
    return %c0_i32, %arg1 : i32, i32
  }
  func.func @transform_3(%arg0: i32, %arg1: i32, %arg2: i32) -> (i32, i32) {
    %c0_i32 = arith.constant 0 : i32
    return %arg0, %arg1 : i32, i32
  }
}

</mosaic_0001>

<llo_original>
// kernel: tpu_custom_call.1
$region0: #{tpu_custom_call.1}
  #allocation0 [shape = 'u32[]', space=smem, size = 0x4, offset = 0x4, fixed_abs, tag = 'smem constant byte address 0x4 - core index']
  #allocation1 [shape = 'u32[144,128]{1,0:T(1,128)}', space=vmem, size = 0x12000, scoped, tag = 'internal scratch']
  #allocation2 [shape = 'f32[256,384]{1,0:T(8,128)}', space=vmem, size = 0x60000, scoped, tag = 'scratch operand']
  %s0 = inlined_call_operand.hbm [shape: f32[512,256], index: 0, kind: input, shape index: {}]
  %s1 = inlined_call_operand.hbm [shape: f32[256,768], index: 1, kind: input, shape index: {}]
  %s2 = inlined_call_operand.hbm [shape: f32[1,768], index: 2, kind: input, shape index: {}]
  %s3 = inlined_call_operand.hbm [shape: f32[512,768], index: 3, kind: output, shape index: {}]
  %s4 = sld [smem:[#allocation0]]
  $region65: #{tpu_custom_call.1} parent=0
    _
  %s6 = ssub.s32 1, %s4
  %s7 = scalar_select 0, %s6, %s4
  $region1: #{tpu_custom_call.1} parent=0
    #allocation3 [shape = 'u8[524288]{0}', space=vmem, size = 0x80000, scoped, tag = 'input window, operand 0']
    #allocation4 [shape = 's32[2]{0}', space=sflag, size = 0x8, scoped, tag = 'scoped memory for tpu_custom_call.1']
    #allocation5 [shape = 's32[2]{0}', space=sflag, size = 0x8, scoped, tag = 'scoped memory for tpu_custom_call.1']
    #allocation6 [shape = 'u8[786432]{0}', space=vmem, size = 0xc0000, scoped, tag = 'input window, operand 1']
    #allocation7 [shape = 's32[2]{0}', space=sflag, size = 0x8, scoped, tag = 'scoped memory for tpu_custom_call.1']
    #allocation8 [shape = 'u8[3072]{0}', space=vmem, size = 0xc00, scoped, tag = 'input window, operand 2']
    #allocation9 [shape = 'u8[786432]{0}', space=vmem, size = 0xc0000, scoped, tag = 'output window, operand 0']
    %8 = vsyncpa [#allocation4], 0
    %s9 = scalar_lea.sflag [#allocation4], 1
    %10 = vsyncpa %s9, 0
    %11 = vsyncpa [#allocation7], 0
    %s12 = scalar_lea.sflag [#allocation7], 1
    %13 = vsyncpa %s12, 0
    %14 = vsyncpa [#allocation5], 0
    %s15 = scalar_lea.sflag [#allocation5], 1
    %16 = vsyncpa %s15, 0
    loop: start=0, step=1, limit=6
    $region2: #{tpu_custom_call.1} parent=1 // loop_pre_header
      _
    $region3: #{tpu_custom_call.1} parent=1 // loop_header
      %s18 = sphi 0, %s22
      %p19 = scmp.ge.s32.totalorder %s18, 6
      %s25 = sphi 0, %s44
      %s26 = sphi 0, %s40
      %s27 = sphi 0, %s36
      %s28 = sphi 0, %s25
      %s29 = sphi 0, %s26
      %s30 = sphi 0, %s27
      %s31 = sphi 0, %s28
      %s32 = sphi 0, %s29
      %s33 = sphi 0, %s30
      %s49 = sphi 0, %s51
      %s52 = sphi 0, %s49
      %s53 = sphi 0, %s52
      %s69 = sphi 0, %s53
      %s77 = sphi 0, %s79
      %s80 = sphi 0, %s77
      %s81 = sphi 0, %s80
      %s97 = sphi 0, %s81
      %s103 = sphi 0, %s105
      %s106 = sphi 0, %s103
      %s107 = sphi 0, %s106
      %s123 = sphi 0, %s107
      %s131 = sphi 0, %s133
      %s134 = sphi 0, %s131
      %s135 = sphi 0, %s134
      %s151 = sphi 0, %s135
    $region4: #{tpu_custom_call.1} parent=1 // loop_header_branch
      %21 = sbr.rel (%p19) target = $region8
    $region5: #{tpu_custom_call.1} parent=1 // loop_body
      %s23 = ssub.s32 %s18, 1
      %s24 = ssub.s32 %s18, 2
      %s34 = sadd.s32 1, %s27
      %p35 = scmp.ge.s32.totalorder %s34, 1
      %s36 = scalar_select %p35, 0, %s34
      %s37 = sadd.s32 1, %s26
      %s38 = scalar_select %p35, %s37, %s26
      %p39 = scmp.ge.s32.totalorder %s38, 2
      %s40 = scalar_select %p39, 0, %s38
      %s41 = sadd.s32 1, %s25
      %s42 = scalar_select %p39, %s41, %s25
      %p43 = scmp.ge.s32.totalorder %s42, 2
      %s44 = scalar_select %p43, 0, %s42
      %s45 = ssub.s32 %s25, %s44
      %s46 = ssub.s32 %s27, %s36
      %s47 = sor.u32 %s45, %s46
      %p48 = scmp.eq.s32.totalorder %s47, 0
      %s50 = sadd.s32 %s49, 1
      %s51 = scalar_select %p48, %s49, %s50
      %p54 = pneg %p48
      %p55 = scmp.eq.s32.totalorder %s18, 3
      %p56 = por %p54, %p55
      %p57 = scmp.ne.s32.totalorder %s49, %s52
      %p58 = scmp.eq.s32.totalorder %s18, 0
      %p59 = por %p57, %p58
      %p60 = scmp.ne.s32.totalorder %s49, %s52
      %p61 = scmp.eq.s32.totalorder %s23, 3
      %p62 = por %p60, %p61
      %p63 = scmp.ne.s32.totalorder %s52, %s53
      %p64 = scmp.eq.s32.totalorder %s23, 0
      %p65 = por %p63, %p64
      %p66 = scmp.ne.s32.totalorder %s52, %s53
      %p67 = scmp.eq.s32.totalorder %s24, 3
      %p68 = por %p66, %p67
      %p70 = scmp.ne.s32.totalorder %s53, %s69
      %p71 = scmp.eq.s32.totalorder %s24, 0
      %p72 = por %p70, %p71
      %s73 = ssub.s32 %s27, %s36
      %s74 = ssub.s32 %s26, %s40
      %s75 = sor.u32 %s73, %s74
      %p76 = scmp.eq.s32.totalorder %s75, 0
      %s78 = sadd.s32 %s77, 1
      %s79 = scalar_select %p76, %s77, %s78
      %p82 = pneg %p76
      %p83 = scmp.eq.s32.totalorder %s18, 3
      %p84 = por %p82, %p83
      %p85 = scmp.ne.s32.totalorder %s77, %s80
      %p86 = scmp.eq.s32.totalorder %s18, 0
      %p87 = por %p85, %p86
      %p88 = scmp.ne.s32.totalorder %s77, %s80
      %p89 = scmp.eq.s32.totalorder %s23, 3
      %p90 = por %p88, %p89
      %p91 = scmp.ne.s32.totalorder %s80, %s81
      %p92 = scmp.eq.s32.totalorder %s23, 0
      %p93 = por %p91, %p92
      %p94 = scmp.ne.s32.totalorder %s80, %s81
      %p95 = scmp.eq.s32.totalorder %s24, 3
      %p96 = por %p94, %p95
      %p98 = scmp.ne.s32.totalorder %s81, %s97
      %p99 = scmp.eq.s32.totalorder %s24, 0
      %p100 = por %p98, %p99
      %s101 = ssub.s32 %s26, %s40
      %p102 = scmp.eq.s32.totalorder %s101, 0
      %s104 = sadd.s32 %s103, 1
      %s105 = scalar_select %p102, %s103, %s104
      %p108 = pneg %p102
      %p109 = scmp.eq.s32.totalorder %s18, 3
      %p110 = por %p108, %p109
      %p111 = scmp.ne.s32.totalorder %s103, %s106
      %p112 = scmp.eq.s32.totalorder %s18, 0
      %p113 = por %p111, %p112
      %p114 = scmp.ne.s32.totalorder %s103, %s106
      %p115 = scmp.eq.s32.totalorder %s23, 3
      %p116 = por %p114, %p115
      %p117 = scmp.ne.s32.totalorder %s106, %s107
      %p118 = scmp.eq.s32.totalorder %s23, 0
      %p119 = por %p117, %p118
      %p120 = scmp.ne.s32.totalorder %s106, %s107
      %p121 = scmp.eq.s32.totalorder %s24, 3
      %p122 = por %p120, %p121
      %p124 = scmp.ne.s32.totalorder %s107, %s123
      %p125 = scmp.eq.s32.totalorder %s24, 0
      %p126 = por %p124, %p125
      %s127 = ssub.s32 %s25, %s44
      %s128 = ssub.s32 %s26, %s40
      %s129 = sor.u32 %s127, %s128
      %p130 = scmp.eq.s32.totalorder %s129, 0
      %s132 = sadd.s32 %s131, 1
      %s133 = scalar_select %p130, %s131, %s132
      %p136 = pneg %p130
      %p137 = scmp.eq.s32.totalorder %s18, 3
      %p138 = por %p136, %p137
      %p139 = scmp.ne.s32.totalorder %s131, %s134
      %p140 = scmp.eq.s32.totalorder %s18, 0
      %p141 = por %p139, %p140
      %p142 = scmp.ne.s32.totalorder %s131, %s134
      %p143 = scmp.eq.s32.totalorder %s23, 3
      %p144 = por %p142, %p143
      %p145 = scmp.ne.s32.totalorder %s134, %s135
      %p146 = scmp.eq.s32.totalorder %s23, 0
      %p147 = por %p145, %p146
      %p148 = scmp.ne.s32.totalorder %s134, %s135
      %p149 = scmp.eq.s32.totalorder %s24, 3
      %p150 = por %p148, %p149
      %p152 = scmp.ne.s32.totalorder %s135, %s151
      %p153 = scmp.eq.s32.totalorder %s24, 0
      %p154 = por %p152, %p153
      %p155 = scmp.le.s32.totalorder 1, %s18
      %p156 = scmp.lt.s32.totalorder %s18, 5
      %p157 = pnand %p155, %p156
      %p158 = pneg %p157
      // Predicated region
      $region9: #{tpu_custom_call.1} parent=5 // pred_check
        _
      $region10: #{tpu_custom_call.1} parent=5 // pred_check_branch
        %160 = sbr.rel (%p157) target = $region12
      $region11: #{tpu_custom_call.1} parent=5 // pred_region
        %s161 = ssub.s32 %s18, 1
      $region12: #{tpu_custom_call.1} parent=5 // pred_fallthru
        _
      %p162 = scmp.lt.s32.totalorder %s18, 4
      // Predicated region
      $region13: #{tpu_custom_call.1} parent=5 // pred_check
        %p163 = pneg %p162
      $region14: #{tpu_custom_call.1} parent=5 // pred_check_branch
        %165 = sbr.rel (%p163) target = $region16
      $region15: #{tpu_custom_call.1} parent=5 // pred_region
        // Predicated region
        $region17: #{tpu_custom_call.1} parent=15 // pred_check
          %p166 = pneg %p59
        $region18: #{tpu_custom_call.1} parent=15 // pred_check_branch
          %168 = sbr.rel (%p166) target = $region20
        $region19: #{tpu_custom_call.1} parent=15 // pred_region
          %s169 = sand.u32 %s49, 1
          %s170 = scalar_lea.sflag [#allocation4], %s169
          %s171 = sand.u32 %s49, 1
          %s172 = smul.addr %s171, 512
          %s173 = scalar_lea.vmem [#allocation3], %s172
          %s174 = smul.u32 32, %s25
          %s175 = smul.u32 2, %s27
          %s177 = ssub.s32 8192, 8192
          %178 = vsyncadd %s170, %s177
          %s179 = smul.addr %s174, 2
          %s180 = sadd.s32 %s175, %s179
          %s181 = smul.addr %s180, 128
          %s182 = scalar_lea.hbm %s0, %s181
          %s183 = sshll.u32 %s173, 4
          %s184 = int_to_ptr.vmem [resolvable:$true] %s183
          %189 = dma.hbm_to_vmem [thread:$0]  %s182, 8192, %s184, %s170, 256, 256, 16
        $region20: #{tpu_custom_call.1} parent=15 // pred_fallthru
          _
        // Predicated region
        $region21: #{tpu_custom_call.1} parent=15 // pred_check
          %p190 = pneg %p87
        $region22: #{tpu_custom_call.1} parent=15 // pred_check_branch
          %192 = sbr.rel (%p190) target = $region24
        $region23: #{tpu_custom_call.1} parent=15 // pred_region
          %s193 = sand.u32 %s18, 1
          %s194 = scalar_lea.sflag [#allocation7], %s193
          %s195 = sand.u32 %s77, 1
          %s196 = smul.addr %s195, 768
          %s197 = scalar_lea.vmem [#allocation6], %s196
          %s198 = smul.u32 32, %s27
          %s199 = smul.u32 3, %s26
          %s201 = ssub.s32 12288, 12288
          %202 = vsyncadd %s194, %s201
          %s203 = smul.addr %s198, 6
          %s204 = sadd.s32 %s199, %s203
          %s205 = smul.addr %s204, 128
          %s206 = scalar_lea.hbm %s1, %s205
          %s207 = sshll.u32 %s197, 4
          %s208 = int_to_ptr.vmem [resolvable:$true] %s207
          %213 = dma.hbm_to_vmem [thread:$0]  %s206, 12288, %s208, %s194, 768, 384, 24
        $region24: #{tpu_custom_call.1} parent=15 // pred_fallthru
          _
        // Predicated region
        $region25: #{tpu_custom_call.1} parent=15 // pred_check
          %p214 = pneg %p113
        $region26: #{tpu_custom_call.1} parent=15 // pred_check_branch
          %216 = sbr.rel (%p214) target = $region28
        $region27: #{tpu_custom_call.1} parent=15 // pred_region
          %s217 = sand.u32 %s18, 1
          %s218 = scalar_lea.sflag [#allocation7], %s217
          %s219 = sand.u32 %s103, 1
          %s220 = smul.addr %s219, 3
          %s221 = scalar_lea.vmem [#allocation8], %s220
          %s222 = smul.u32 3, %s26
          %s224 = ssub.s32 48, 48
          %225 = vsyncadd %s218, %s224
          %s226 = smul.addr %s222, 16
          %s227 = scalar_lea.hbm %s2, %s226
          %s229 = sshll.u32 %s221, 4
          %s230 = int_to_ptr.vmem [resolvable:$true] %s229
          %232 = dma.hbm_to_vmem [thread:$0]  %s227, 48, %s230, %s218
        $region28: #{tpu_custom_call.1} parent=15 // pred_fallthru
          _
      $region16: #{tpu_custom_call.1} parent=5 // pred_fallthru
        _
      %p233 = scmp.le.s32.totalorder 1, %s18
      %p234 = scmp.lt.s32.totalorder %s18, 5
      %p235 = pnand %p233, %p234
      %p236 = pneg %p235
      // Predicated region
      $region29: #{tpu_custom_call.1} parent=5 // pred_check
        _
      $region30: #{tpu_custom_call.1} parent=5 // pred_check_branch
        %238 = sbr.rel (%p235) target = $region32
      $region31: #{tpu_custom_call.1} parent=5 // pred_region
        %s239 = ssub.s32 %s18, 1
        %s240 = sand.u32 %s52, 1
        %s241 = scalar_lea.sflag [#allocation4], %s240
        %s242 = sand.u32 %s52, 1
        %s243 = smul.addr %s242, 512
        %s244 = scalar_lea.vmem [#allocation3], %s243
        // Predicated region
        $region33: #{tpu_custom_call.1} parent=31 // pred_check
          %p245 = pneg %p65
        $region34: #{tpu_custom_call.1} parent=31 // pred_check_branch
          %247 = sbr.rel (%p245) target = $region36
        $region35: #{tpu_custom_call.1} parent=31 // pred_region
          %248 = dma.done %s241, 8192
        $region36: #{tpu_custom_call.1} parent=31 // pred_fallthru
          _
        %s249 = sand.u32 %s23, 1
        %s250 = scalar_lea.sflag [#allocation7], %s249
        %s251 = sand.u32 %s80, 1
        %s252 = smul.addr %s251, 768
        %s253 = scalar_lea.vmem [#allocation6], %s252
        // Predicated region
        $region37: #{tpu_custom_call.1} parent=31 // pred_check
          %p254 = pneg %p93
        $region38: #{tpu_custom_call.1} parent=31 // pred_check_branch
          %256 = sbr.rel (%p254) target = $region40
        $region39: #{tpu_custom_call.1} parent=31 // pred_region
          %257 = dma.done %s250, 12288
        $region40: #{tpu_custom_call.1} parent=31 // pred_fallthru
          _
        %s258 = sand.u32 %s23, 1
        %s259 = scalar_lea.sflag [#allocation7], %s258
        %s260 = sand.u32 %s106, 1
        %s261 = smul.addr %s260, 3
        %s262 = scalar_lea.vmem [#allocation8], %s261
        // Predicated region
        $region41: #{tpu_custom_call.1} parent=31 // pred_check
          %p263 = pneg %p119
        $region42: #{tpu_custom_call.1} parent=31 // pred_check_branch
          %265 = sbr.rel (%p263) target = $region44
        $region43: #{tpu_custom_call.1} parent=31 // pred_region
          %266 = dma.done %s259, 48
        $region44: #{tpu_custom_call.1} parent=31 // pred_fallthru
          _
        %s267 = sand.u32 %s52, 1
        %s268 = scalar_lea.sflag [#allocation4], %s267
        %s269 = sand.u32 %s52, 1
        %s270 = smul.addr %s269, 512
        %s271 = scalar_lea.vmem [#allocation3], %s270
        %p272 = pneg %p65
        %p273 = pneg %p62
        %s274 = sand.u32 %s23, 1
        %s275 = scalar_lea.sflag [#allocation7], %s274
        %s276 = sand.u32 %s80, 1
        %s277 = smul.addr %s276, 768
        %s278 = scalar_lea.vmem [#allocation6], %s277
        %p279 = pneg %p93
        %p280 = pneg %p90
        %s281 = sand.u32 %s23, 1
        %s282 = scalar_lea.sflag [#allocation7], %s281
        %s283 = sand.u32 %s106, 1
        %s284 = smul.addr %s283, 3
        %s285 = scalar_lea.vmem [#allocation8], %s284
        %p286 = pneg %p119
        %p287 = pneg %p116
        %p288 = pneg %p147
        %p289 = pneg %p144
        %s290 = sand.u32 %s134, 1
        %s291 = scalar_lea.sflag [#allocation5], %s290
        %s292 = sand.u32 %s134, 1
        %s293 = smul.addr %s292, 768
        %s294 = scalar_lea.vmem [#allocation9], %s293
        %s295 = smul.u32 32, %s28
        %s296 = smul.u32 2, %s30
        %s297 = smul.u32 32, %s30
        %s298 = smul.u32 3, %s29
        %s299 = smul.u32 3, %s29
        %s300 = smul.u32 32, %s28
        %s301 = smul.u32 3, %s29
        %p302 = scmp.eq.s32.totalorder %s30, 0
        // Predicated region
        $region45: #{tpu_custom_call.1} parent=31 // pred_check
          %p303 = pneg %p302
        $region46: #{tpu_custom_call.1} parent=31 // pred_check_branch
          %305 = sbr.rel (%p303) target = $region48
        $region47: #{tpu_custom_call.1} parent=31 // pred_region
          %306 = vst [vmem:[#allocation2] sm:$0xff] 0.0
          %307 = vst [vmem:[#allocation2 + $0x8] sm:$0xff] 0.0
          %308 = vst [vmem:[#allocation2 + $0x10] sm:$0xff] 0.0
          %309 = vst [vmem:[#allocation2 + $0x18] sm:$0xff] 0.0
          %310 = vst [vmem:[#allocation2 + $0x20] sm:$0xff] 0.0
          %311 = vst [vmem:[#allocation2 + $0x28] sm:$0xff] 0.0
          %312 = vst [vmem:[#allocation2 + $0x30] sm:$0xff] 0.0
          %313 = vst [vmem:[#allocation2 + $0x38] sm:$0xff] 0.0
          %314 = vst [vmem:[#allocation2 + $0x40] sm:$0xff] 0.0
          %315 = vst [vmem:[#allocation2 + $0x48] sm:$0xff] 0.0
          %316 = vst [vmem:[#allocation2 + $0x50] sm:$0xff] 0.0
          %317 = vst [vmem:[#allocation2 + $0x58] sm:$0xff] 0.0
          %318 = vst [vmem:[#allocation2 + $0x60] sm:$0xff] 0.0
          %319 = vst [vmem:[#allocation2 + $0x68] sm:$0xff] 0.0
          %320 = vst [vmem:[#allocation2 + $0x70] sm:$0xff] 0.0
          %321 = vst [vmem:[#allocation2 + $0x78] sm:$0xff] 0.0
          %322 = vst [vmem:[#allocation2 + $0x80] sm:$0xff] 0.0
          %323 = vst [vmem:[#allocation2 + $0x88] sm:$0xff] 0.0
          %324 = vst [vmem:[#allocation2 + $0x90] sm:$0xff] 0.0
          %325 = vst [vmem:[#allocation2 + $0x98] sm:$0xff] 0.0
          %326 = vst [vmem:[#allocation2 + $0xa0] sm:$0xff] 0.0
          %327 = vst [vmem:[#allocation2 + $0xa8] sm:$0xff] 0.0
          %328 = vst [vmem:[#allocation2 + $0xb0] sm:$0xff] 0.0
          %329 = vst [vmem:[#allocation2 + $0xb8] sm:$0xff] 0.0
          %330 = vst [vmem:[#allocation2 + $0xc0] sm:$0xff] 0.0
          %331 = vst [vmem:[#allocation2 + $0xc8] sm:$0xff] 0.0
          %332 = vst [vmem:[#allocation2 + $0xd0] sm:$0xff] 0.0
          %333 = vst [vmem:[#allocation2 + $0xd8] sm:$0xff] 0.0
          %334 = vst [vmem:[#allocation2 + $0xe0] sm:$0xff] 0.0
          %335 = vst [vmem:[#allocation2 + $0xe8] sm:$0xff] 0.0
          %336 = vst [vmem:[#allocation2 + $0xf0] sm:$0xff] 0.0
          %337 = vst [vmem:[#allocation2 + $0xf8] sm:$0xff] 0.0
          %338 = vst [vmem:[#allocation2 + $0x100] sm:$0xff] 0.0
          %339 = vst [vmem:[#allocation2 + $0x108] sm:$0xff] 0.0
          %340 = vst [vmem:[#allocation2 + $0x110] sm:$0xff] 0.0
          %341 = vst [vmem:[#allocation2 + $0x118] sm:$0xff] 0.0
          %342 = vst [vmem:[#allocation2 + $0x120] sm:$0xff] 0.0
          %343 = vst [vmem:[#allocation2 + $0x128] sm:$0xff] 0.0
          %344 = vst [vmem:[#allocation2 + $0x130] sm:$0xff] 0.0
          %345 = vst [vmem:[#allocation2 + $0x138] sm:$0xff] 0.0
          %346 = vst [vmem:[#allocation2 + $0x140] sm:$0xff] 0.0
          %347 = vst [vmem:[#allocation2 + $0x148] sm:$0xff] 0.0
          %348 = vst [vmem:[#allocation2 + $0x150] sm:$0xff] 0.0
          %349 = vst [vmem:[#allocation2 + $0x158] sm:$0xff] 0.0
          %350 = vst [vmem:[#allocation2 + $0x160] sm:$0xff] 0.0
          %351 = vst [vmem:[#allocation2 + $0x168] sm:$0xff] 0.0
          %352 = vst [vmem:[#allocation2 + $0x170] sm:$0xff] 0.0
          %353 = vst [vmem:[#allocation2 + $0x178] sm:$0xff] 0.0
          %354 = vst [vmem:[#allocation2 + $0x180] sm:$0xff] 0.0
          %355 = vst [vmem:[#allocation2 + $0x188] sm:$0xff] 0.0
          %356 = vst [vmem:[#allocation2 + $0x190] sm:$0xff] 0.0
          %357 = vst [vmem:[#allocation2 + $0x198] sm:$0xff] 0.0
          %358 = vst [vmem:[#allocation2 + $0x1a0] sm:$0xff] 0.0
          %359 = vst [vmem:[#allocation2 + $0x1a8] sm:$0xff] 0.0
          %360 = vst [vmem:[#allocation2 + $0x1b0] sm:$0xff] 0.0
          %361 = vst [vmem:[#allocation2 + $0x1b8] sm:$0xff] 0.0
          %362 = vst [vmem:[#allocation2 + $0x1c0] sm:$0xff] 0.0
          %363 = vst [vmem:[#allocation2 + $0x1c8] sm:$0xff] 0.0
          %364 = vst [vmem:[#allocation2 + $0x1d0] sm:$0xff] 0.0
          %365 = vst [vmem:[#allocation2 + $0x1d8] sm:$0xff] 0.0
          %366 = vst [vmem:[#allocation2 + $0x1e0] sm:$0xff] 0.0
          %367 = vst [vmem:[#allocation2 + $0x1e8] sm:$0xff] 0.0
          %368 = vst [vmem:[#allocation2 + $0x1f0] sm:$0xff] 0.0
          %369 = vst [vmem:[#allocation2 + $0x1f8] sm:$0xff] 0.0
          %370 = vst [vmem:[#allocation2 + $0x200] sm:$0xff] 0.0
          %371 = vst [vmem:[#allocation2 + $0x208] sm:$0xff] 0.0
          %372 = vst [vmem:[#allocation2 + $0x210] sm:$0xff] 0.0
          %373 = vst [vmem:[#allocation2 + $0x218] sm:$0xff] 0.0
          %374 = vst [vmem:[#allocation2 + $0x220] sm:$0xff] 0.0
          %375 = vst [vmem:[#allocation2 + $0x228] sm:$0xff] 0.0
          %376 = vst [vmem:[#allocation2 + $0x230] sm:$0xff] 0.0
          %377 = vst [vmem:[#allocation2 + $0x238] sm:$0xff] 0.0
          %378 = vst [vmem:[#allocation2 + $0x240] sm:$0xff] 0.0
          %379 = vst [vmem:[#allocation2 + $0x248] sm:$0xff] 0.0
          %380 = vst [vmem:[#allocation2 + $0x250] sm:$0xff] 0.0
          %381 = vst [vmem:[#allocation2 + $0x258] sm:$0xff] 0.0
          %382 = vst [vmem:[#allocation2 + $0x260] sm:$0xff] 0.0
          %383 = vst [vmem:[#allocation2 + $0x268] sm:$0xff] 0.0
          %384 = vst [vmem:[#allocation2 + $0x270] sm:$0xff] 0.0
          %385 = vst [vmem:[#allocation2 + $0x278] sm:$0xff] 0.0
          %386 = vst [vmem:[#allocation2 + $0x280] sm:$0xff] 0.0
          %387 = vst [vmem:[#allocation2 + $0x288] sm:$0xff] 0.0
          %388 = vst [vmem:[#allocation2 + $0x290] sm:$0xff] 0.0
          %389 = vst [vmem:[#allocation2 + $0x298] sm:$0xff] 0.0
          %390 = vst [vmem:[#allocation2 + $0x2a0] sm:$0xff] 0.0
          %391 = vst [vmem:[#allocation2 + $0x2a8] sm:$0xff] 0.0
          %392 = vst [vmem:[#allocation2 + $0x2b0] sm:$0xff] 0.0
          %393 = vst [vmem:[#allocation2 + $0x2b8] sm:$0xff] 0.0
          %394 = vst [vmem:[#allocation2 + $0x2c0] sm:$0xff] 0.0
          %395 = vst [vmem:[#allocation2 + $0x2c8] sm:$0xff] 0.0
          %396 = vst [vmem:[#allocation2 + $0x2d0] sm:$0xff] 0.0
          %397 = vst [vmem:[#allocation2 + $0x2d8] sm:$0xff] 0.0
          %398 = vst [vmem:[#allocation2 + $0x2e0] sm:$0xff] 0.0
          %399 = vst [vmem:[#allocation2 + $0x2e8] sm:$0xff] 0.0
          %400 = vst [vmem:[#allocation2 + $0x2f0] sm:$0xff] 0.0
          %401 = vst [vmem:[#allocation2 + $0x2f8] sm:$0xff] 0.0
        $region48: #{tpu_custom_call.1} parent=31 // pred_fallthru
          _
        %v402 = vld [vmem:[#allocation2] sm:$0xff]
        %v403 = vld [vmem:[#allocation2 + $0x8] sm:$0xff]
        %v404 = vld [vmem:[#allocation2 + $0x10] sm:$0xff]
        %v405 = vld [vmem:[#allocation2 + $0x18] sm:$0xff]
        %v406 = vld [vmem:[#allocation2 + $0x20] sm:$0xff]
        %v407 = vld [vmem:[#allocation2 + $0x28] sm:$0xff]
        %v408 = vld [vmem:[#allocation2 + $0x30] sm:$0xff]
        %v409 = vld [vmem:[#allocation2 + $0x38] sm:$0xff]
        %v410 = vld [vmem:[#allocation2 + $0x40] sm:$0xff]
        %v411 = vld [vmem:[#allocation2 + $0x48] sm:$0xff]
        %v412 = vld [vmem:[#allocation2 + $0x50] sm:$0xff]
        %v413 = vld [vmem:[#allocation2 + $0x58] sm:$0xff]
        %v414 = vld [vmem:[#allocation2 + $0x60] sm:$0xff]
        %v415 = vld [vmem:[#allocation2 + $0x68] sm:$0xff]
        %v416 = vld [vmem:[#allocation2 + $0x70] sm:$0xff]
        %v417 = vld [vmem:[#allocation2 + $0x78] sm:$0xff]
        %v418 = vld [vmem:[#allocation2 + $0x80] sm:$0xff]
        %v419 = vld [vmem:[#allocation2 + $0x88] sm:$0xff]
        %v420 = vld [vmem:[#allocation2 + $0x90] sm:$0xff]
        %v421 = vld [vmem:[#allocation2 + $0x98] sm:$0xff]
        %v422 = vld [vmem:[#allocation2 + $0xa0] sm:$0xff]
        %v423 = vld [vmem:[#allocation2 + $0xa8] sm:$0xff]
        %v424 = vld [vmem:[#allocation2 + $0xb0] sm:$0xff]
        %v425 = vld [vmem:[#allocation2 + $0xb8] sm:$0xff]
        %v426 = vld [vmem:[#allocation2 + $0xc0] sm:$0xff]
        %v427 = vld [vmem:[#allocation2 + $0xc8] sm:$0xff]
        %v428 = vld [vmem:[#allocation2 + $0xd0] sm:$0xff]
        %v429 = vld [vmem:[#allocation2 + $0xd8] sm:$0xff]
        %v430 = vld [vmem:[#allocation2 + $0xe0] sm:$0xff]
        %v431 = vld [vmem:[#allocation2 + $0xe8] sm:$0xff]
        %v432 = vld [vmem:[#allocation2 + $0xf0] sm:$0xff]
        %v433 = vld [vmem:[#allocation2 + $0xf8] sm:$0xff]
        %v434 = vld [vmem:[#allocation2 + $0x100] sm:$0xff]
        %v435 = vld [vmem:[#allocation2 + $0x108] sm:$0xff]
        %v436 = vld [vmem:[#allocation2 + $0x110] sm:$0xff]
        %v437 = vld [vmem:[#allocation2 + $0x118] sm:$0xff]
        %v438 = vld [vmem:[#allocation2 + $0x120] sm:$0xff]
        %v439 = vld [vmem:[#allocation2 + $0x128] sm:$0xff]
        %v440 = vld [vmem:[#allocation2 + $0x130] sm:$0xff]
        %v441 = vld [vmem:[#allocation2 + $0x138] sm:$0xff]
        %v442 = vld [vmem:[#allocation2 + $0x140] sm:$0xff]
        %v443 = vld [vmem:[#allocation2 + $0x148] sm:$0xff]
        %v444 = vld [vmem:[#allocation2 + $0x150] sm:$0xff]
        %v445 = vld [vmem:[#allocation2 + $0x158] sm:$0xff]
        %v446 = vld [vmem:[#allocation2 + $0x160] sm:$0xff]
        %v447 = vld [vmem:[#allocation2 + $0x168] sm:$0xff]
        %v448 = vld [vmem:[#allocation2 + $0x170] sm:$0xff]
        %v449 = vld [vmem:[#allocation2 + $0x178] sm:$0xff]
        %v450 = vld [vmem:[#allocation2 + $0x180] sm:$0xff]
        %v451 = vld [vmem:[#allocation2 + $0x188] sm:$0xff]
        %v452 = vld [vmem:[#allocation2 + $0x190] sm:$0xff]
        %v453 = vld [vmem:[#allocation2 + $0x198] sm:$0xff]
        %v454 = vld [vmem:[#allocation2 + $0x1a0] sm:$0xff]
        %v455 = vld [vmem:[#allocation2 + $0x1a8] sm:$0xff]
        %v456 = vld [vmem:[#allocation2 + $0x1b0] sm:$0xff]
        %v457 = vld [vmem:[#allocation2 + $0x1b8] sm:$0xff]
        %v458 = vld [vmem:[#allocation2 + $0x1c0] sm:$0xff]
        %v459 = vld [vmem:[#allocation2 + $0x1c8] sm:$0xff]
        %v460 = vld [vmem:[#allocation2 + $0x1d0] sm:$0xff]
        %v461 = vld [vmem:[#allocation2 + $0x1d8] sm:$0xff]
        %v462 = vld [vmem:[#allocation2 + $0x1e0] sm:$0xff]
        %v463 = vld [vmem:[#allocation2 + $0x1e8] sm:$0xff]
        %v464 = vld [vmem:[#allocation2 + $0x1f0] sm:$0xff]
        %v465 = vld [vmem:[#allocation2 + $0x1f8] sm:$0xff]
        %v466 = vld [vmem:[#allocation2 + $0x200] sm:$0xff]
        %v467 = vld [vmem:[#allocation2 + $0x208] sm:$0xff]
        %v468 = vld [vmem:[#allocation2 + $0x210] sm:$0xff]
        %v469 = vld [vmem:[#allocation2 + $0x218] sm:$0xff]
        %v470 = vld [vmem:[#allocation2 + $0x220] sm:$0xff]
        %v471 = vld [vmem:[#allocation2 + $0x228] sm:$0xff]
        %v472 = vld [vmem:[#allocation2 + $0x230] sm:$0xff]
        %v473 = vld [vmem:[#allocation2 + $0x238] sm:$0xff]
        %v474 = vld [vmem:[#allocation2 + $0x240] sm:$0xff]
        %v475 = vld [vmem:[#allocation2 + $0x248] sm:$0xff]
        %v476 = vld [vmem:[#allocation2 + $0x250] sm:$0xff]
        %v477 = vld [vmem:[#allocation2 + $0x258] sm:$0xff]
        %v478 = vld [vmem:[#allocation2 + $0x260] sm:$0xff]
        %v479 = vld [vmem:[#allocation2 + $0x268] sm:$0xff]
        %v480 = vld [vmem:[#allocation2 + $0x270] sm:$0xff]
        %v481 = vld [vmem:[#allocation2 + $0x278] sm:$0xff]
        %v482 = vld [vmem:[#allocation2 + $0x280] sm:$0xff]
        %v483 = vld [vmem:[#allocation2 + $0x288] sm:$0xff]
        %v484 = vld [vmem:[#allocation2 + $0x290] sm:$0xff]
        %v485 = vld [vmem:[#allocation2 + $0x298] sm:$0xff]
        %v486 = vld [vmem:[#allocation2 + $0x2a0] sm:$0xff]
        %v487 = vld [vmem:[#allocation2 + $0x2a8] sm:$0xff]
        %v488 = vld [vmem:[#allocation2 + $0x2b0] sm:$0xff]
        %v489 = vld [vmem:[#allocation2 + $0x2b8] sm:$0xff]
        %v490 = vld [vmem:[#allocation2 + $0x2c0] sm:$0xff]
        %v491 = vld [vmem:[#allocation2 + $0x2c8] sm:$0xff]
        %v492 = vld [vmem:[#allocation2 + $0x2d0] sm:$0xff]
        %v493 = vld [vmem:[#allocation2 + $0x2d8] sm:$0xff]
        %v494 = vld [vmem:[#allocation2 + $0x2e0] sm:$0xff]
        %v495 = vld [vmem:[#allocation2 + $0x2e8] sm:$0xff]
        %v496 = vld [vmem:[#allocation2 + $0x2f0] sm:$0xff]
        %v497 = vld [vmem:[#allocation2 + $0x2f8] sm:$0xff]
        %v498 = vld [vmem:[%s244] sm:$0xff]
        %v499 = vld [vmem:[%s244 + $0x8] sm:$0xff]
        %v500 = vld [vmem:[%s244 + $0x10] sm:$0xff]
        %v501 = vld [vmem:[%s244 + $0x18] sm:$0xff]
        %v502 = vld [vmem:[%s244 + $0x20] sm:$0xff]
        %v503 = vld [vmem:[%s244 + $0x28] sm:$0xff]
        %v504 = vld [vmem:[%s244 + $0x30] sm:$0xff]
        %v505 = vld [vmem:[%s244 + $0x38] sm:$0xff]
        %v506 = vld [vmem:[%s244 + $0x40] sm:$0xff]
        %v507 = vld [vmem:[%s244 + $0x48] sm:$0xff]
        %v508 = vld [vmem:[%s244 + $0x50] sm:$0xff]
        %v509 = vld [vmem:[%s244 + $0x58] sm:$0xff]
        %v510 = vld [vmem:[%s244 + $0x60] sm:$0xff]
        %v511 = vld [vmem:[%s244 + $0x68] sm:$0xff]
        %v512 = vld [vmem:[%s244 + $0x70] sm:$0xff]
        %v513 = vld [vmem:[%s244 + $0x78] sm:$0xff]
        %v514 = vld [vmem:[%s244 + $0x80] sm:$0xff]
        %v515 = vld [vmem:[%s244 + $0x88] sm:$0xff]
        %v516 = vld [vmem:[%s244 + $0x90] sm:$0xff]
        %v517 = vld [vmem:[%s244 + $0x98] sm:$0xff]
        %v518 = vld [vmem:[%s244 + $0xa0] sm:$0xff]
        %v519 = vld [vmem:[%s244 + $0xa8] sm:$0xff]
        %v520 = vld [vmem:[%s244 + $0xb0] sm:$0xff]
        %v521 = vld [vmem:[%s244 + $0xb8] sm:$0xff]
        %v522 = vld [vmem:[%s244 + $0xc0] sm:$0xff]
        %v523 = vld [vmem:[%s244 + $0xc8] sm:$0xff]
        %v524 = vld [vmem:[%s244 + $0xd0] sm:$0xff]
        %v525 = vld [vmem:[%s244 + $0xd8] sm:$0xff]
        %v526 = vld [vmem:[%s244 + $0xe0] sm:$0xff]
        %v527 = vld [vmem:[%s244 + $0xe8] sm:$0xff]
        %v528 = vld [vmem:[%s244 + $0xf0] sm:$0xff]
        %v529 = vld [vmem:[%s244 + $0xf8] sm:$0xff]
        %v530 = vld [vmem:[%s244 + $0x100] sm:$0xff]
        %v531 = vld [vmem:[%s244 + $0x108] sm:$0xff]
        %v532 = vld [vmem:[%s244 + $0x110] sm:$0xff]
        %v533 = vld [vmem:[%s244 + $0x118] sm:$0xff]
        %v534 = vld [vmem:[%s244 + $0x120] sm:$0xff]
        %v535 = vld [vmem:[%s244 + $0x128] sm:$0xff]
        %v536 = vld [vmem:[%s244 + $0x130] sm:$0xff]
        %v537 = vld [vmem:[%s244 + $0x138] sm:$0xff]
        %v538 = vld [vmem:[%s244 + $0x140] sm:$0xff]
        %v539 = vld [vmem:[%s244 + $0x148] sm:$0xff]
        %v540 = vld [vmem:[%s244 + $0x150] sm:$0xff]
        %v541 = vld [vmem:[%s244 + $0x158] sm:$0xff]
        %v542 = vld [vmem:[%s244 + $0x160] sm:$0xff]
        %v543 = vld [vmem:[%s244 + $0x168] sm:$0xff]
        %v544 = vld [vmem:[%s244 + $0x170] sm:$0xff]
        %v545 = vld [vmem:[%s244 + $0x178] sm:$0xff]
        %v546 = vld [vmem:[%s244 + $0x180] sm:$0xff]
        %v547 = vld [vmem:[%s244 + $0x188] sm:$0xff]
        %v548 = vld [vmem:[%s244 + $0x190] sm:$0xff]
        %v549 = vld [vmem:[%s244 + $0x198] sm:$0xff]
        %v550 = vld [vmem:[%s244 + $0x1a0] sm:$0xff]
        %v551 = vld [vmem:[%s244 + $0x1a8] sm:$0xff]
        %v552 = vld [vmem:[%s244 + $0x1b0] sm:$0xff]
        %v553 = vld [vmem:[%s244 + $0x1b8] sm:$0xff]
        %v554 = vld [vmem:[%s244 + $0x1c0] sm:$0xff]
        %v555 = vld [vmem:[%s244 + $0x1c8] sm:$0xff]
        %v556 = vld [vmem:[%s244 + $0x1d0] sm:$0xff]
        %v557 = vld [vmem:[%s244 + $0x1d8] sm:$0xff]
        %v558 = vld [vmem:[%s244 + $0x1e0] sm:$0xff]
        %v559 = vld [vmem:[%s244 + $0x1e8] sm:$0xff]
        %v560 = vld [vmem:[%s244 + $0x1f0] sm:$0xff]
        %v561 = vld [vmem:[%s244 + $0x1f8] sm:$0xff]
        %v562 = vld [vmem:[%s253] sm:$0xff]
        %v563 = vld [vmem:[%s253 + $0x8] sm:$0xff]
        %v564 = vld [vmem:[%s253 + $0x10] sm:$0xff]
        %v565 = vld [vmem:[%s253 + $0x18] sm:$0xff]
        %v566 = vld [vmem:[%s253 + $0x20] sm:$0xff]
        %v567 = vld [vmem:[%s253 + $0x28] sm:$0xff]
        %v568 = vld [vmem:[%s253 + $0x30] sm:$0xff]
        %v569 = vld [vmem:[%s253 + $0x38] sm:$0xff]
        %v570 = vld [vmem:[%s253 + $0x40] sm:$0xff]
        %v571 = vld [vmem:[%s253 + $0x48] sm:$0xff]
        %v572 = vld [vmem:[%s253 + $0x50] sm:$0xff]
        %v573 = vld [vmem:[%s253 + $0x58] sm:$0xff]
        %v574 = vld [vmem:[%s253 + $0x60] sm:$0xff]
        %v575 = vld [vmem:[%s253 + $0x68] sm:$0xff]
        %v576 = vld [vmem:[%s253 + $0x70] sm:$0xff]
        %v577 = vld [vmem:[%s253 + $0x78] sm:$0xff]
        %v578 = vld [vmem:[%s253 + $0x80] sm:$0xff]
        %v579 = vld [vmem:[%s253 + $0x88] sm:$0xff]
        %v580 = vld [vmem:[%s253 + $0x90] sm:$0xff]
        %v581 = vld [vmem:[%s253 + $0x98] sm:$0xff]
        %v582 = vld [vmem:[%s253 + $0xa0] sm:$0xff]
        %v583 = vld [vmem:[%s253 + $0xa8] sm:$0xff]
        %v584 = vld [vmem:[%s253 + $0xb0] sm:$0xff]
        %v585 = vld [vmem:[%s253 + $0xb8] sm:$0xff]
        %v586 = vld [vmem:[%s253 + $0xc0] sm:$0xff]
        %v587 = vld [vmem:[%s253 + $0xc8] sm:$0xff]
        %v588 = vld [vmem:[%s253 + $0xd0] sm:$0xff]
        %v589 = vld [vmem:[%s253 + $0xd8] sm:$0xff]
        %v590 = vld [vmem:[%s253 + $0xe0] sm:$0xff]
        %v591 = vld [vmem:[%s253 + $0xe8] sm:$0xff]
        %v592 = vld [vmem:[%s253 + $0xf0] sm:$0xff]
        %v593 = vld [vmem:[%s253 + $0xf8] sm:$0xff]
        %v594 = vld [vmem:[%s253 + $0x100] sm:$0xff]
        %v595 = vld [vmem:[%s253 + $0x108] sm:$0xff]
        %v596 = vld [vmem:[%s253 + $0x110] sm:$0xff]
        %v597 = vld [vmem:[%s253 + $0x118] sm:$0xff]
        %v598 = vld [vmem:[%s253 + $0x120] sm:$0xff]
        %v599 = vld [vmem:[%s253 + $0x128] sm:$0xff]
        %v600 = vld [vmem:[%s253 + $0x130] sm:$0xff]
        %v601 = vld [vmem:[%s253 + $0x138] sm:$0xff]
        %v602 = vld [vmem:[%s253 + $0x140] sm:$0xff]
        %v603 = vld [vmem:[%s253 + $0x148] sm:$0xff]
        %v604 = vld [vmem:[%s253 + $0x150] sm:$0xff]
        %v605 = vld [vmem:[%s253 + $0x158] sm:$0xff]
        %v606 = vld [vmem:[%s253 + $0x160] sm:$0xff]
        %v607 = vld [vmem:[%s253 + $0x168] sm:$0xff]
        %v608 = vld [vmem:[%s253 + $0x170] sm:$0xff]
        %v609 = vld [vmem:[%s253 + $0x178] sm:$0xff]
        %v610 = vld [vmem:[%s253 + $0x180] sm:$0xff]
        %v611 = vld [vmem:[%s253 + $0x188] sm:$0xff]
        %v612 = vld [vmem:[%s253 + $0x190] sm:$0xff]
        %v613 = vld [vmem:[%s253 + $0x198] sm:$0xff]
        %v614 = vld [vmem:[%s253 + $0x1a0] sm:$0xff]
        %v615 = vld [vmem:[%s253 + $0x1a8] sm:$0xff]
        %v616 = vld [vmem:[%s253 + $0x1b0] sm:$0xff]
        %v617 = vld [vmem:[%s253 + $0x1b8] sm:$0xff]
        %v618 = vld [vmem:[%s253 + $0x1c0] sm:$0xff]
        %v619 = vld [vmem:[%s253 + $0x1c8] sm:$0xff]
        %v620 = vld [vmem:[%s253 + $0x1d0] sm:$0xff]
        %v621 = vld [vmem:[%s253 + $0x1d8] sm:$0xff]
        %v622 = vld [vmem:[%s253 + $0x1e0] sm:$0xff]
        %v623 = vld [vmem:[%s253 + $0x1e8] sm:$0xff]
        %v624 = vld [vmem:[%s253 + $0x1f0] sm:$0xff]
        %v625 = vld [vmem:[%s253 + $0x1f8] sm:$0xff]
        %v626 = vld [vmem:[%s253 + $0x200] sm:$0xff]
        %v627 = vld [vmem:[%s253 + $0x208] sm:$0xff]
        %v628 = vld [vmem:[%s253 + $0x210] sm:$0xff]
        %v629 = vld [vmem:[%s253 + $0x218] sm:$0xff]
        %v630 = vld [vmem:[%s253 + $0x220] sm:$0xff]
        %v631 = vld [vmem:[%s253 + $0x228] sm:$0xff]
        %v632 = vld [vmem:[%s253 + $0x230] sm:$0xff]
        %v633 = vld [vmem:[%s253 + $0x238] sm:$0xff]
        %v634 = vld [vmem:[%s253 + $0x240] sm:$0xff]
        %v635 = vld [vmem:[%s253 + $0x248] sm:$0xff]
        %v636 = vld [vmem:[%s253 + $0x250] sm:$0xff]
        %v637 = vld [vmem:[%s253 + $0x258] sm:$0xff]
        %v638 = vld [vmem:[%s253 + $0x260] sm:$0xff]
        %v639 = vld [vmem:[%s253 + $0x268] sm:$0xff]
        %v640 = vld [vmem:[%s253 + $0x270] sm:$0xff]
        %v641 = vld [vmem:[%s253 + $0x278] sm:$0xff]
        %v642 = vld [vmem:[%s253 + $0x280] sm:$0xff]
        %v643 = vld [vmem:[%s253 + $0x288] sm:$0xff]
        %v644 = vld [vmem:[%s253 + $0x290] sm:$0xff]
        %v645 = vld [vmem:[%s253 + $0x298] sm:$0xff]
        %v646 = vld [vmem:[%s253 + $0x2a0] sm:$0xff]
        %v647 = vld [vmem:[%s253 + $0x2a8] sm:$0xff]
        %v648 = vld [vmem:[%s253 + $0x2b0] sm:$0xff]
        %v649 = vld [vmem:[%s253 + $0x2b8] sm:$0xff]
        %v650 = vld [vmem:[%s253 + $0x2c0] sm:$0xff]
        %v651 = vld [vmem:[%s253 + $0x2c8] sm:$0xff]
        %v652 = vld [vmem:[%s253 + $0x2d0] sm:$0xff]
        %v653 = vld [vmem:[%s253 + $0x2d8] sm:$0xff]
        %v654 = vld [vmem:[%s253 + $0x2e0] sm:$0xff]
        %v655 = vld [vmem:[%s253 + $0x2e8] sm:$0xff]
        %v656 = vld [vmem:[%s253 + $0x2f0] sm:$0xff]
        %v657 = vld [vmem:[%s253 + $0x2f8] sm:$0xff]
        %658 = vmatprep.subr.mxu0 %v608
        %659 = vmatpush1.msra.mxu0 %v607
        %660 = vmatprep.subr.mxu0 %v605
        %661 = vmatpush1.msra.mxu0 %v604
        %662 = vmatprep.subr.mxu0 %v602
        %663 = vmatpush1.msra.mxu0 %v601
        %664 = vmatprep.subr.mxu0 %v599
        %665 = vmatpush1.msra.mxu0 %v598
        %666 = vmatprep.subr.mxu0 %v596
        %667 = vmatpush1.msra.mxu0 %v595
        %668 = vmatprep.subr.mxu0 %v593
        %669 = vmatpush1.msra.mxu0 %v592
        %670 = vmatprep.subr.mxu0 %v590
        %671 = vmatpush1.msra.mxu0 %v589
        %672 = vmatprep.subr.mxu0 %v587
        %673 = vmatpush1.msra.mxu0 %v586
        %674 = vmatprep.subr.mxu0 %v584
        %675 = vmatpush1.msra.mxu0 %v583
        %676 = vmatprep.subr.mxu0 %v581
        %677 = vmatpush1.msra.mxu0 %v580
        %678 = vmatprep.subr.mxu0 %v578
        %679 = vmatpush1.msra.mxu0 %v577
        %680 = vmatprep.subr.mxu0 %v575
        %681 = vmatpush1.msra.mxu0 %v574
        %682 = vmatprep.subr.mxu0 %v572
        %683 = vmatpush1.msra.mxu0 %v571
        %684 = vmatprep.subr.mxu0 %v569
        %685 = vmatpush1.msra.mxu0 %v568
        %686 = vmatprep.subr.mxu0 %v566
        %687 = vmatpush1.msra.mxu0 %v565
        %688 = vmatprep.subr.mxu0 %v563
        %689 = vmatpush1.msra.mxu0 %v562
        %690 = vmatprep.subr.mxu0 %v656
        %691 = vmatpush2.msra.mxu0 %v655
        %692 = vmatprep.subr.mxu0 %v653
        %693 = vmatpush2.msra.mxu0 %v652
        %694 = vmatprep.subr.mxu0 %v650
        %695 = vmatpush2.msra.mxu0 %v649
        %696 = vmatprep.subr.mxu0 %v647
        %697 = vmatpush2.msra.mxu0 %v646
        %698 = vmatprep.subr.mxu0 %v644
        %699 = vmatpush2.msra.mxu0 %v643
        %700 = vmatprep.subr.mxu0 %v641
        %701 = vmatpush2.msra.mxu0 %v640
        %702 = vmatprep.subr.mxu0 %v638
        %703 = vmatpush2.msra.mxu0 %v637
        %704 = vmatprep.subr.mxu0 %v635
        %705 = vmatpush2.msra.mxu0 %v634
        %706 = vmatprep.subr.mxu0 %v632
        %707 = vmatpush2.msra.mxu0 %v631
        %708 = vmatprep.subr.mxu0 %v629
        %709 = vmatpush2.msra.mxu0 %v628
        %710 = vmatprep.subr.mxu0 %v626
        %711 = vmatpush2.msra.mxu0 %v625
        %712 = vmatprep.subr.mxu0 %v623
        %713 = vmatpush2.msra.mxu0 %v622
        %714 = vmatprep.subr.mxu0 %v620
        %715 = vmatpush2.msra.mxu0 %v619
        %716 = vmatprep.subr.mxu0 %v617
        %717 = vmatpush2.msra.mxu0 %v616
        %718 = vmatprep.subr.mxu0 %v614
        %719 = vmatpush2.msra.mxu0 %v613
        %720 = vmatprep.subr.mxu0 %v611
        %721 = vmatpush2.msra.mxu0 %v610
        %722 = vmatprep.mubr.f32.mxu0 %v499
        %723 = vmatmul.mubr.f32.gmra.mxu0 %v498
        %v724 = vpop.f32.mrf.mxu0
        %v725 = vadd.f32 0.0, %v724
        %v726 = vpop.f32.mrf.mxu0
        %v727 = vadd.f32 0.0, %v726
        %728 = vmatprep.mubr.f32.mxu0 %v501
        %729 = vmatmul.mubr.f32.gmra.mxu0 %v500
        %v730 = vpop.f32.mrf.mxu0
        %v731 = vadd.f32 0.0, %v730
        %v732 = vpop.f32.mrf.mxu0
        %v733 = vadd.f32 0.0, %v732
        %734 = vmatprep.mubr.f32.mxu0 %v503
        %735 = vmatmul.mubr.f32.gmra.mxu0 %v502
        %v736 = vpop.f32.mrf.mxu0
        %v737 = vadd.f32 0.0, %v736
        %v738 = vpop.f32.mrf.mxu0
        %v739 = vadd.f32 0.0, %v738
        %740 = vmatprep.mubr.f32.mxu0 %v505
        %741 = vmatmul.mubr.f32.gmra.mxu0 %v504
        %v742 = vpop.f32.mrf.mxu0
        %v743 = vadd.f32 0.0, %v742
        %v744 = vpop.f32.mrf.mxu0
        %v745 = vadd.f32 0.0, %v744
        %746 = vmatprep.mubr.f32.mxu0 %v507
        %747 = vmatmul.mubr.f32.gmra.mxu0 %v506
        %v748 = vpop.f32.mrf.mxu0
        %v749 = vadd.f32 0.0, %v748
        %v750 = vpop.f32.mrf.mxu0
        %v751 = vadd.f32 0.0, %v750
        %752 = vmatprep.mubr.f32.mxu0 %v509
        %753 = vmatmul.mubr.f32.gmra.mxu0 %v508
        %v754 = vpop.f32.mrf.mxu0
        %v755 = vadd.f32 0.0, %v754
        %v756 = vpop.f32.mrf.mxu0
        %v757 = vadd.f32 0.0, %v756
        %758 = vmatprep.mubr.f32.mxu0 %v511
        %759 = vmatmul.mubr.f32.gmra.mxu0 %v510
        %v760 = vpop.f32.mrf.mxu0
        %v761 = vadd.f32 0.0, %v760
        %v762 = vpop.f32.mrf.mxu0
        %v763 = vadd.f32 0.0, %v762
        %764 = vmatprep.mubr.f32.mxu0 %v513
        %765 = vmatmul.mubr.f32.gmra.mxu0 %v512
        %v766 = vpop.f32.mrf.mxu0
        %v767 = vadd.f32 0.0, %v766
        %v768 = vpop.f32.mrf.mxu0
        %v769 = vadd.f32 0.0, %v768
        %770 = vmatprep.mubr.f32.mxu0 %v515
        %771 = vmatmul.mubr.f32.gmra.mxu0 %v514
        %v772 = vpop.f32.mrf.mxu0
        %v773 = vadd.f32 0.0, %v772
        %v774 = vpop.f32.mrf.mxu0
        %v775 = vadd.f32 0.0, %v774
        %776 = vmatprep.mubr.f32.mxu0 %v517
        %777 = vmatmul.mubr.f32.gmra.mxu0 %v516
        %v778 = vpop.f32.mrf.mxu0
        %v779 = vadd.f32 0.0, %v778
        %v780 = vpop.f32.mrf.mxu0
        %v781 = vadd.f32 0.0, %v780
        %782 = vmatprep.mubr.f32.mxu0 %v519
        %783 = vmatmul.mubr.f32.gmra.mxu0 %v518
        %v784 = vpop.f32.mrf.mxu0
        %v785 = vadd.f32 0.0, %v784
        %v786 = vpop.f32.mrf.mxu0
        %v787 = vadd.f32 0.0, %v786
        %788 = vmatprep.mubr.f32.mxu0 %v521
        %789 = vmatmul.mubr.f32.gmra.mxu0 %v520
        %v790 = vpop.f32.mrf.mxu0
        %v791 = vadd.f32 0.0, %v790
        %v792 = vpop.f32.mrf.mxu0
        %v793 = vadd.f32 0.0, %v792
        %794 = vmatprep.mubr.f32.mxu0 %v523
        %795 = vmatmul.mubr.f32.gmra.mxu0 %v522
        %v796 = vpop.f32.mrf.mxu0
        %v797 = vadd.f32 0.0, %v796
        %v798 = vpop.f32.mrf.mxu0
        %v799 = vadd.f32 0.0, %v798
        %800 = vmatprep.mubr.f32.mxu0 %v525
        %801 = vmatmul.mubr.f32.gmra.mxu0 %v524
        %v802 = vpop.f32.mrf.mxu0
        %v803 = vadd.f32 0.0, %v802
        %v804 = vpop.f32.mrf.mxu0
        %v805 = vadd.f32 0.0, %v804
        %806 = vmatprep.mubr.f32.mxu0 %v527
        %807 = vmatmul.mubr.f32.gmra.mxu0 %v526
        %v808 = vpop.f32.mrf.mxu0
        %v809 = vadd.f32 0.0, %v808
        %v810 = vpop.f32.mrf.mxu0
        %v811 = vadd.f32 0.0, %v810
        %812 = vmatprep.mubr.f32.mxu0 %v529
        %813 = vmatmul.mubr.f32.gmra.mxu0 %v528
        %v814 = vpop.f32.mrf.mxu0
        %v815 = vadd.f32 0.0, %v814
        %v816 = vpop.f32.mrf.mxu0
        %v817 = vadd.f32 0.0, %v816
        %818 = vmatprep.mubr.f32.mxu0 %v531
        %819 = vmatmul.mubr.f32.gmra.mxu0 %v530
        %v820 = vpop.f32.mrf.mxu0
        %v821 = vadd.f32 0.0, %v820
        %v822 = vpop.f32.mrf.mxu0
        %v823 = vadd.f32 0.0, %v822
        %824 = vmatprep.mubr.f32.mxu0 %v533
        %825 = vmatmul.mubr.f32.gmra.mxu0 %v532
        %v826 = vpop.f32.mrf.mxu0
        %v827 = vadd.f32 0.0, %v826
        %v828 = vpop.f32.mrf.mxu0
        %v829 = vadd.f32 0.0, %v828
        %830 = vmatprep.mubr.f32.mxu0 %v535
        %831 = vmatmul.mubr.f32.gmra.mxu0 %v534
        %v832 = vpop.f32.mrf.mxu0
        %v833 = vadd.f32 0.0, %v832
        %v834 = vpop.f32.mrf.mxu0
        %v835 = vadd.f32 0.0, %v834
        %836 = vmatprep.mubr.f32.mxu0 %v537
        %837 = vmatmul.mubr.f32.gmra.mxu0 %v536
        %v838 = vpop.f32.mrf.mxu0
        %v839 = vadd.f32 0.0, %v838
        %v840 = vpop.f32.mrf.mxu0
        %v841 = vadd.f32 0.0, %v840
        %842 = vmatprep.mubr.f32.mxu0 %v539
        %843 = vmatmul.mubr.f32.gmra.mxu0 %v538
        %v844 = vpop.f32.mrf.mxu0
        %v845 = vadd.f32 0.0, %v844
        %v846 = vpop.f32.mrf.mxu0
        %v847 = vadd.f32 0.0, %v846
        %848 = vmatprep.mubr.f32.mxu0 %v541
        %849 = vmatmul.mubr.f32.gmra.mxu0 %v540
        %v850 = vpop.f32.mrf.mxu0
        %v851 = vadd.f32 0.0, %v850
        %v852 = vpop.f32.mrf.mxu0
        %v853 = vadd.f32 0.0, %v852
        %854 = vmatprep.mubr.f32.mxu0 %v543
        %855 = vmatmul.mubr.f32.gmra.mxu0 %v542
        %v856 = vpop.f32.mrf.mxu0
        %v857 = vadd.f32 0.0, %v856
        %v858 = vpop.f32.mrf.mxu0
        %v859 = vadd.f32 0.0, %v858
        %860 = vmatprep.mubr.f32.mxu0 %v545
        %861 = vmatmul.mubr.f32.gmra.mxu0 %v544
        %v862 = vpop.f32.mrf.mxu0
        %v863 = vadd.f32 0.0, %v862
        %v864 = vpop.f32.mrf.mxu0
        %v865 = vadd.f32 0.0, %v864
        %866 = vmatprep.mubr.f32.mxu0 %v547
        %867 = vmatmul.mubr.f32.gmra.mxu0 %v546
        %v868 = vpop.f32.mrf.mxu0
        %v869 = vadd.f32 0.0, %v868
        %v870 = vpop.f32.mrf.mxu0
        %v871 = vadd.f32 0.0, %v870
        %872 = vmatprep.mubr.f32.mxu0 %v549
        %873 = vmatmul.mubr.f32.gmra.mxu0 %v548
        %v874 = vpop.f32.mrf.mxu0
        %v875 = vadd.f32 0.0, %v874
        %v876 = vpop.f32.mrf.mxu0
        %v877 = vadd.f32 0.0, %v876
        %878 = vmatprep.mubr.f32.mxu0 %v551
        %879 = vmatmul.mubr.f32.gmra.mxu0 %v550
        %v880 = vpop.f32.mrf.mxu0
        %v881 = vadd.f32 0.0, %v880
        %v882 = vpop.f32.mrf.mxu0
        %v883 = vadd.f32 0.0, %v882
        %884 = vmatprep.mubr.f32.mxu0 %v553
        %885 = vmatmul.mubr.f32.gmra.mxu0 %v552
        %v886 = vpop.f32.mrf.mxu0
        %v887 = vadd.f32 0.0, %v886
        %v888 = vpop.f32.mrf.mxu0
        %v889 = vadd.f32 0.0, %v888
        %890 = vmatprep.mubr.f32.mxu0 %v555
        %891 = vmatmul.mubr.f32.gmra.mxu0 %v554
        %v892 = vpop.f32.mrf.mxu0
        %v893 = vadd.f32 0.0, %v892
        %v894 = vpop.f32.mrf.mxu0
        %v895 = vadd.f32 0.0, %v894
        %896 = vmatprep.mubr.f32.mxu0 %v557
        %897 = vmatmul.mubr.f32.gmra.mxu0 %v556
        %v898 = vpop.f32.mrf.mxu0
        %v899 = vadd.f32 0.0, %v898
        %v900 = vpop.f32.mrf.mxu0
        %v901 = vadd.f32 0.0, %v900
        %902 = vmatprep.mubr.f32.mxu0 %v559
        %903 = vmatmul.mubr.f32.gmra.mxu0 %v558
        %v904 = vpop.f32.mrf.mxu0
        %v905 = vadd.f32 0.0, %v904
        %v906 = vpop.f32.mrf.mxu0
        %v907 = vadd.f32 0.0, %v906
        %908 = vmatprep.mubr.f32.mxu0 %v561
        %909 = vmatmul.mubr.f32.gmra.mxu0 %v560
        %v910 = vpop.f32.mrf.mxu0
        %v911 = vadd.f32 0.0, %v910
        %v912 = vpop.f32.mrf.mxu0
        %v913 = vadd.f32 0.0, %v912
        %914 = vdwg.mxu0
        %915 = vmatprep.subr.mxu0 0.0
        %916 = vmatpush1.msra.mxu0 %v609
        %917 = vmatprep.subr.mxu0 0.0
        %918 = vmatpush1.msra.mxu0 %v606
        %919 = vmatprep.subr.mxu0 0.0
        %920 = vmatpush1.msra.mxu0 %v603
        %921 = vmatprep.subr.mxu0 0.0
        %922 = vmatpush1.msra.mxu0 %v600
        %923 = vmatprep.subr.mxu0 0.0
        %924 = vmatpush1.msra.mxu0 %v597
        %925 = vmatprep.subr.mxu0 0.0
        %926 = vmatpush1.msra.mxu0 %v594
        %927 = vmatprep.subr.mxu0 0.0
        %928 = vmatpush1.msra.mxu0 %v591
        %929 = vmatprep.subr.mxu0 0.0
        %930 = vmatpush1.msra.mxu0 %v588
        %931 = vmatprep.subr.mxu0 0.0
        %932 = vmatpush1.msra.mxu0 %v585
        %933 = vmatprep.subr.mxu0 0.0
        %934 = vmatpush1.msra.mxu0 %v582
        %935 = vmatprep.subr.mxu0 0.0
        %936 = vmatpush1.msra.mxu0 %v579
        %937 = vmatprep.subr.mxu0 0.0
        %938 = vmatpush1.msra.mxu0 %v576
        %939 = vmatprep.subr.mxu0 0.0
        %940 = vmatpush1.msra.mxu0 %v573
        %941 = vmatprep.subr.mxu0 0.0
        %942 = vmatpush1.msra.mxu0 %v570
        %943 = vmatprep.subr.mxu0 0.0
        %944 = vmatpush1.msra.mxu0 %v567
        %945 = vmatprep.subr.mxu0 0.0
        %946 = vmatpush1.msra.mxu0 %v564
        %947 = vmatprep.subr.mxu0 0.0
        %948 = vmatpush2.msra.mxu0 %v657
        %949 = vmatprep.subr.mxu0 0.0
        %950 = vmatpush2.msra.mxu0 %v654
        %951 = vmatprep.subr.mxu0 0.0
        %952 = vmatpush2.msra.mxu0 %v651
        %953 = vmatprep.subr.mxu0 0.0
        %954 = vmatpush2.msra.mxu0 %v648
        %955 = vmatprep.subr.mxu0 0.0
        %956 = vmatpush2.msra.mxu0 %v645
        %957 = vmatprep.subr.mxu0 0.0
        %958 = vmatpush2.msra.mxu0 %v642
        %959 = vmatprep.subr.mxu0 0.0
        %960 = vmatpush2.msra.mxu0 %v639
        %961 = vmatprep.subr.mxu0 0.0
        %962 = vmatpush2.msra.mxu0 %v636
        %963 = vmatprep.subr.mxu0 0.0
        %964 = vmatpush2.msra.mxu0 %v633
        %965 = vmatprep.subr.mxu0 0.0
        %966 = vmatpush2.msra.mxu0 %v630
        %967 = vmatprep.subr.mxu0 0.0
        %968 = vmatpush2.msra.mxu0 %v627
        %969 = vmatprep.subr.mxu0 0.0
        %970 = vmatpush2.msra.mxu0 %v624
        %971 = vmatprep.subr.mxu0 0.0
        %972 = vmatpush2.msra.mxu0 %v621
        %973 = vmatprep.subr.mxu0 0.0
        %974 = vmatpush2.msra.mxu0 %v618
        %975 = vmatprep.subr.mxu0 0.0
        %976 = vmatpush2.msra.mxu0 %v615
        %977 = vmatprep.subr.mxu0 0.0
        %978 = vmatpush2.msra.mxu0 %v612
        %979 = vmatprep.mubr.f32.mxu0 %v499
        %980 = vmatmul.mubr.f32.gmra.mxu0 %v498
        %v981 = vpop.f32.mrf.mxu0
        %v982 = vadd.f32 0.0, %v981
        %v983 = vpop.f32.mrf.mxu0
        %984 = vmatprep.mubr.f32.mxu0 %v501
        %985 = vmatmul.mubr.f32.gmra.mxu0 %v500
        %v986 = vpop.f32.mrf.mxu0
        %v987 = vadd.f32 0.0, %v986
        %v988 = vpop.f32.mrf.mxu0
        %989 = vmatprep.mubr.f32.mxu0 %v503
        %990 = vmatmul.mubr.f32.gmra.mxu0 %v502
        %v991 = vpop.f32.mrf.mxu0
        %v992 = vadd.f32 0.0, %v991
        %v993 = vpop.f32.mrf.mxu0
        %994 = vmatprep.mubr.f32.mxu0 %v505
        %995 = vmatmul.mubr.f32.gmra.mxu0 %v504
        %v996 = vpop.f32.mrf.mxu0
        %v997 = vadd.f32 0.0, %v996
        %v998 = vpop.f32.mrf.mxu0
        %999 = vmatprep.mubr.f32.mxu0 %v507
        %1000 = vmatmul.mubr.f32.gmra.mxu0 %v506
        %v1001 = vpop.f32.mrf.mxu0
        %v1002 = vadd.f32 0.0, %v1001
        %v1003 = vpop.f32.mrf.mxu0
        %1004 = vmatprep.mubr.f32.mxu0 %v509
        %1005 = vmatmul.mubr.f32.gmra.mxu0 %v508
        %v1006 = vpop.f32.mrf.mxu0
        %v1007 = vadd.f32 0.0, %v1006
        %v1008 = vpop.f32.mrf.mxu0
        %1009 = vmatprep.mubr.f32.mxu0 %v511
        %1010 = vmatmul.mubr.f32.gmra.mxu0 %v510
        %v1011 = vpop.f32.mrf.mxu0
        %v1012 = vadd.f32 0.0, %v1011
        %v1013 = vpop.f32.mrf.mxu0
        %1014 = vmatprep.mubr.f32.mxu0 %v513
        %1015 = vmatmul.mubr.f32.gmra.mxu0 %v512
        %v1016 = vpop.f32.mrf.mxu0
        %v1017 = vadd.f32 0.0, %v1016
        %v1018 = vpop.f32.mrf.mxu0
        %1019 = vmatprep.mubr.f32.mxu0 %v515
        %1020 = vmatmul.mubr.f32.gmra.mxu0 %v514
        %v1021 = vpop.f32.mrf.mxu0
        %v1022 = vadd.f32 0.0, %v1021
        %v1023 = vpop.f32.mrf.mxu0
        %1024 = vmatprep.mubr.f32.mxu0 %v517
        %1025 = vmatmul.mubr.f32.gmra.mxu0 %v516
        %v1026 = vpop.f32.mrf.mxu0
        %v1027 = vadd.f32 0.0, %v1026
        %v1028 = vpop.f32.mrf.mxu0
        %1029 = vmatprep.mubr.f32.mxu0 %v519
        %1030 = vmatmul.mubr.f32.gmra.mxu0 %v518
        %v1031 = vpop.f32.mrf.mxu0
        %v1032 = vadd.f32 0.0, %v1031
        %v1033 = vpop.f32.mrf.mxu0
        %1034 = vmatprep.mubr.f32.mxu0 %v521
        %1035 = vmatmul.mubr.f32.gmra.mxu0 %v520
        %v1036 = vpop.f32.mrf.mxu0
        %v1037 = vadd.f32 0.0, %v1036
        %v1038 = vpop.f32.mrf.mxu0
        %1039 = vmatprep.mubr.f32.mxu0 %v523
        %1040 = vmatmul.mubr.f32.gmra.mxu0 %v522
        %v1041 = vpop.f32.mrf.mxu0
        %v1042 = vadd.f32 0.0, %v1041
        %v1043 = vpop.f32.mrf.mxu0
        %1044 = vmatprep.mubr.f32.mxu0 %v525
        %1045 = vmatmul.mubr.f32.gmra.mxu0 %v524
        %v1046 = vpop.f32.mrf.mxu0
        %v1047 = vadd.f32 0.0, %v1046
        %v1048 = vpop.f32.mrf.mxu0
        %1049 = vmatprep.mubr.f32.mxu0 %v527
        %1050 = vmatmul.mubr.f32.gmra.mxu0 %v526
        %v1051 = vpop.f32.mrf.mxu0
        %v1052 = vadd.f32 0.0, %v1051
        %v1053 = vpop.f32.mrf.mxu0
        %1054 = vmatprep.mubr.f32.mxu0 %v529
        %1055 = vmatmul.mubr.f32.gmra.mxu0 %v528
        %v1056 = vpop.f32.mrf.mxu0
        %v1057 = vadd.f32 0.0, %v1056
        %v1058 = vpop.f32.mrf.mxu0
        %1059 = vmatprep.mubr.f32.mxu0 %v531
        %1060 = vmatmul.mubr.f32.gmra.mxu0 %v530
        %v1061 = vpop.f32.mrf.mxu0
        %v1062 = vadd.f32 0.0, %v1061
        %v1063 = vpop.f32.mrf.mxu0
        %1064 = vmatprep.mubr.f32.mxu0 %v533
        %1065 = vmatmul.mubr.f32.gmra.mxu0 %v532
        %v1066 = vpop.f32.mrf.mxu0
        %v1067 = vadd.f32 0.0, %v1066
        %v1068 = vpop.f32.mrf.mxu0
        %1069 = vmatprep.mubr.f32.mxu0 %v535
        %1070 = vmatmul.mubr.f32.gmra.mxu0 %v534
        %v1071 = vpop.f32.mrf.mxu0
        %v1072 = vadd.f32 0.0, %v1071
        %v1073 = vpop.f32.mrf.mxu0
        %1074 = vmatprep.mubr.f32.mxu0 %v537
        %1075 = vmatmul.mubr.f32.gmra.mxu0 %v536
        %v1076 = vpop.f32.mrf.mxu0
        %v1077 = vadd.f32 0.0, %v1076
        %v1078 = vpop.f32.mrf.mxu0
        %1079 = vmatprep.mubr.f32.mxu0 %v539
        %1080 = vmatmul.mubr.f32.gmra.mxu0 %v538
        %v1081 = vpop.f32.mrf.mxu0
        %v1082 = vadd.f32 0.0, %v1081
        %v1083 = vpop.f32.mrf.mxu0
        %1084 = vmatprep.mubr.f32.mxu0 %v541
        %1085 = vmatmul.mubr.f32.gmra.mxu0 %v540
        %v1086 = vpop.f32.mrf.mxu0
        %v1087 = vadd.f32 0.0, %v1086
        %v1088 = vpop.f32.mrf.mxu0
        %1089 = vmatprep.mubr.f32.mxu0 %v543
        %1090 = vmatmul.mubr.f32.gmra.mxu0 %v542
        %v1091 = vpop.f32.mrf.mxu0
        %v1092 = vadd.f32 0.0, %v1091
        %v1093 = vpop.f32.mrf.mxu0
        %1094 = vmatprep.mubr.f32.mxu0 %v545
        %1095 = vmatmul.mubr.f32.gmra.mxu0 %v544
        %v1096 = vpop.f32.mrf.mxu0
        %v1097 = vadd.f32 0.0, %v1096
        %v1098 = vpop.f32.mrf.mxu0
        %1099 = vmatprep.mubr.f32.mxu0 %v547
        %1100 = vmatmul.mubr.f32.gmra.mxu0 %v546
        %v1101 = vpop.f32.mrf.mxu0
        %v1102 = vadd.f32 0.0, %v1101
        %v1103 = vpop.f32.mrf.mxu0
        %1104 = vmatprep.mubr.f32.mxu0 %v549
        %1105 = vmatmul.mubr.f32.gmra.mxu0 %v548
        %v1106 = vpop.f32.mrf.mxu0
        %v1107 = vadd.f32 0.0, %v1106
        %v1108 = vpop.f32.mrf.mxu0
        %1109 = vmatprep.mubr.f32.mxu0 %v551
        %1110 = vmatmul.mubr.f32.gmra.mxu0 %v550
        %v1111 = vpop.f32.mrf.mxu0
        %v1112 = vadd.f32 0.0, %v1111
        %v1113 = vpop.f32.mrf.mxu0
        %1114 = vmatprep.mubr.f32.mxu0 %v553
        %1115 = vmatmul.mubr.f32.gmra.mxu0 %v552
        %v1116 = vpop.f32.mrf.mxu0
        %v1117 = vadd.f32 0.0, %v1116
        %v1118 = vpop.f32.mrf.mxu0
        %1119 = vmatprep.mubr.f32.mxu0 %v555
        %1120 = vmatmul.mubr.f32.gmra.mxu0 %v554
        %v1121 = vpop.f32.mrf.mxu0
        %v1122 = vadd.f32 0.0, %v1121
        %v1123 = vpop.f32.mrf.mxu0
        %1124 = vmatprep.mubr.f32.mxu0 %v557
        %1125 = vmatmul.mubr.f32.gmra.mxu0 %v556
        %v1126 = vpop.f32.mrf.mxu0
        %v1127 = vadd.f32 0.0, %v1126
        %v1128 = vpop.f32.mrf.mxu0
        %1129 = vmatprep.mubr.f32.mxu0 %v559
        %1130 = vmatmul.mubr.f32.gmra.mxu0 %v558
        %v1131 = vpop.f32.mrf.mxu0
        %v1132 = vadd.f32 0.0, %v1131
        %v1133 = vpop.f32.mrf.mxu0
        %1134 = vmatprep.mubr.f32.mxu0 %v561
        %1135 = vmatmul.mubr.f32.gmra.mxu0 %v560
        %v1136 = vpop.f32.mrf.mxu0
        %v1137 = vadd.f32 0.0, %v1136
        %v1138 = vpop.f32.mrf.mxu0
        %1139 = vdwg.mxu0
        %v1140 = vadd.f32 %v402, %v725
        %v1141 = vadd.f32 %v403, %v727
        %v1142 = vadd.f32 %v404, %v982
        %v1143 = vadd.f32 %v405, %v731
        %v1144 = vadd.f32 %v406, %v733
        %v1145 = vadd.f32 %v407, %v987
        %v1146 = vadd.f32 %v408, %v737
        %v1147 = vadd.f32 %v409, %v739
        %v1148 = vadd.f32 %v410, %v992
        %v1149 = vadd.f32 %v411, %v743
        %v1150 = vadd.f32 %v412, %v745
        %v1151 = vadd.f32 %v413, %v997
        %v1152 = vadd.f32 %v414, %v749
        %v1153 = vadd.f32 %v415, %v751
        %v1154 = vadd.f32 %v416, %v1002
        %v1155 = vadd.f32 %v417, %v755
        %v1156 = vadd.f32 %v418, %v757
        %v1157 = vadd.f32 %v419, %v1007
        %v1158 = vadd.f32 %v420, %v761
        %v1159 = vadd.f32 %v421, %v763
        %v1160 = vadd.f32 %v422, %v1012
        %v1161 = vadd.f32 %v423, %v767
        %v1162 = vadd.f32 %v424, %v769
        %v1163 = vadd.f32 %v425, %v1017
        %v1164 = vadd.f32 %v426, %v773
        %v1165 = vadd.f32 %v427, %v775
        %v1166 = vadd.f32 %v428, %v1022
        %v1167 = vadd.f32 %v429, %v779
        %v1168 = vadd.f32 %v430, %v781
        %v1169 = vadd.f32 %v431, %v1027
        %v1170 = vadd.f32 %v432, %v785
        %v1171 = vadd.f32 %v433, %v787
        %v1172 = vadd.f32 %v434, %v1032
        %v1173 = vadd.f32 %v435, %v791
        %v1174 = vadd.f32 %v436, %v793
        %v1175 = vadd.f32 %v437, %v1037
        %v1176 = vadd.f32 %v438, %v797
        %v1177 = vadd.f32 %v439, %v799
        %v1178 = vadd.f32 %v440, %v1042
        %v1179 = vadd.f32 %v441, %v803
        %v1180 = vadd.f32 %v442, %v805
        %v1181 = vadd.f32 %v443, %v1047
        %v1182 = vadd.f32 %v444, %v809
        %v1183 = vadd.f32 %v445, %v811
        %v1184 = vadd.f32 %v446, %v1052
        %v1185 = vadd.f32 %v447, %v815
        %v1186 = vadd.f32 %v448, %v817
        %v1187 = vadd.f32 %v449, %v1057
        %v1188 = vadd.f32 %v450, %v821
        %v1189 = vadd.f32 %v451, %v823
        %v1190 = vadd.f32 %v452, %v1062
        %v1191 = vadd.f32 %v453, %v827
        %v1192 = vadd.f32 %v454, %v829
        %v1193 = vadd.f32 %v455, %v1067
        %v1194 = vadd.f32 %v456, %v833
        %v1195 = vadd.f32 %v457, %v835
        %v1196 = vadd.f32 %v458, %v1072
        %v1197 = vadd.f32 %v459, %v839
        %v1198 = vadd.f32 %v460, %v841
        %v1199 = vadd.f32 %v461, %v1077
        %v1200 = vadd.f32 %v462, %v845
        %v1201 = vadd.f32 %v463, %v847
        %v1202 = vadd.f32 %v464, %v1082
        %v1203 = vadd.f32 %v465, %v851
        %v1204 = vadd.f32 %v466, %v853
        %v1205 = vadd.f32 %v467, %v1087
        %v1206 = vadd.f32 %v468, %v857
        %v1207 = vadd.f32 %v469, %v859
        %v1208 = vadd.f32 %v470, %v1092
        %v1209 = vadd.f32 %v471, %v863
        %v1210 = vadd.f32 %v472, %v865
        %v1211 = vadd.f32 %v473, %v1097
        %v1212 = vadd.f32 %v474, %v869
        %v1213 = vadd.f32 %v475, %v871
        %v1214 = vadd.f32 %v476, %v1102
        %v1215 = vadd.f32 %v477, %v875
        %v1216 = vadd.f32 %v478, %v877
        %v1217 = vadd.f32 %v479, %v1107
        %v1218 = vadd.f32 %v480, %v881
        %v1219 = vadd.f32 %v481, %v883
        %v1220 = vadd.f32 %v482, %v1112
        %v1221 = vadd.f32 %v483, %v887
        %v1222 = vadd.f32 %v484, %v889
        %v1223 = vadd.f32 %v485, %v1117
        %v1224 = vadd.f32 %v486, %v893
        %v1225 = vadd.f32 %v487, %v895
        %v1226 = vadd.f32 %v488, %v1122
        %v1227 = vadd.f32 %v489, %v899
        %v1228 = vadd.f32 %v490, %v901
        %v1229 = vadd.f32 %v491, %v1127
        %v1230 = vadd.f32 %v492, %v905
        %v1231 = vadd.f32 %v493, %v907
        %v1232 = vadd.f32 %v494, %v1132
        %v1233 = vadd.f32 %v495, %v911
        %v1234 = vadd.f32 %v496, %v913
        %v1235 = vadd.f32 %v497, %v1137
        %1236 = vst [vmem:[#allocation2] sm:$0xff] %v1140
        %1237 = vst [vmem:[#allocation2 + $0x8] sm:$0xff] %v1141
        %1238 = vst [vmem:[#allocation2 + $0x10] sm:$0xff] %v1142
        %1239 = vst [vmem:[#allocation2 + $0x18] sm:$0xff] %v1143
        %1240 = vst [vmem:[#allocation2 + $0x20] sm:$0xff] %v1144
        %1241 = vst [vmem:[#allocation2 + $0x28] sm:$0xff] %v1145
        %1242 = vst [vmem:[#allocation2 + $0x30] sm:$0xff] %v1146
        %1243 = vst [vmem:[#allocation2 + $0x38] sm:$0xff] %v1147
        %1244 = vst [vmem:[#allocation2 + $0x40] sm:$0xff] %v1148
        %1245 = vst [vmem:[#allocation2 + $0x48] sm:$0xff] %v1149
        %1246 = vst [vmem:[#allocation2 + $0x50] sm:$0xff] %v1150
        %1247 = vst [vmem:[#allocation2 + $0x58] sm:$0xff] %v1151
        %1248 = vst [vmem:[#allocation2 + $0x60] sm:$0xff] %v1152
        %1249 = vst [vmem:[#allocation2 + $0x68] sm:$0xff] %v1153
        %1250 = vst [vmem:[#allocation2 + $0x70] sm:$0xff] %v1154
        %1251 = vst [vmem:[#allocation2 + $0x78] sm:$0xff] %v1155
        %1252 = vst [vmem:[#allocation2 + $0x80] sm:$0xff] %v1156
        %1253 = vst [vmem:[#allocation2 + $0x88] sm:$0xff] %v1157
        %1254 = vst [vmem:[#allocation2 + $0x90] sm:$0xff] %v1158
        %1255 = vst [vmem:[#allocation2 + $0x98] sm:$0xff] %v1159
        %1256 = vst [vmem:[#allocation2 + $0xa0] sm:$0xff] %v1160
        %1257 = vst [vmem:[#allocation2 + $0xa8] sm:$0xff] %v1161
        %1258 = vst [vmem:[#allocation2 + $0xb0] sm:$0xff] %v1162
        %1259 = vst [vmem:[#allocation2 + $0xb8] sm:$0xff] %v1163
        %1260 = vst [vmem:[#allocation2 + $0xc0] sm:$0xff] %v1164
        %1261 = vst [vmem:[#allocation2 + $0xc8] sm:$0xff] %v1165
        %1262 = vst [vmem:[#allocation2 + $0xd0] sm:$0xff] %v1166
        %1263 = vst [vmem:[#allocation2 + $0xd8] sm:$0xff] %v1167
        %1264 = vst [vmem:[#allocation2 + $0xe0] sm:$0xff] %v1168
        %1265 = vst [vmem:[#allocation2 + $0xe8] sm:$0xff] %v1169
        %1266 = vst [vmem:[#allocation2 + $0xf0] sm:$0xff] %v1170
        %1267 = vst [vmem:[#allocation2 + $0xf8] sm:$0xff] %v1171
        %1268 = vst [vmem:[#allocation2 + $0x100] sm:$0xff] %v1172
        %1269 = vst [vmem:[#allocation2 + $0x108] sm:$0xff] %v1173
        %1270 = vst [vmem:[#allocation2 + $0x110] sm:$0xff] %v1174
        %1271 = vst [vmem:[#allocation2 + $0x118] sm:$0xff] %v1175
        %1272 = vst [vmem:[#allocation2 + $0x120] sm:$0xff] %v1176
        %1273 = vst [vmem:[#allocation2 + $0x128] sm:$0xff] %v1177
        %1274 = vst [vmem:[#allocation2 + $0x130] sm:$0xff] %v1178
        %1275 = vst [vmem:[#allocation2 + $0x138] sm:$0xff] %v1179
        %1276 = vst [vmem:[#allocation2 + $0x140] sm:$0xff] %v1180
        %1277 = vst [vmem:[#allocation2 + $0x148] sm:$0xff] %v1181
        %1278 = vst [vmem:[#allocation2 + $0x150] sm:$0xff] %v1182
        %1279 = vst [vmem:[#allocation2 + $0x158] sm:$0xff] %v1183
        %1280 = vst [vmem:[#allocation2 + $0x160] sm:$0xff] %v1184
        %1281 = vst [vmem:[#allocation2 + $0x168] sm:$0xff] %v1185
        %1282 = vst [vmem:[#allocation2 + $0x170] sm:$0xff] %v1186
        %1283 = vst [vmem:[#allocation2 + $0x178] sm:$0xff] %v1187
        %1284 = vst [vmem:[#allocation2 + $0x180] sm:$0xff] %v1188
        %1285 = vst [vmem:[#allocation2 + $0x188] sm:$0xff] %v1189
        %1286 = vst [vmem:[#allocation2 + $0x190] sm:$0xff] %v1190
        %1287 = vst [vmem:[#allocation2 + $0x198] sm:$0xff] %v1191
        %1288 = vst [vmem:[#allocation2 + $0x1a0] sm:$0xff] %v1192
        %1289 = vst [vmem:[#allocation2 + $0x1a8] sm:$0xff] %v1193
        %1290 = vst [vmem:[#allocation2 + $0x1b0] sm:$0xff] %v1194
        %1291 = vst [vmem:[#allocation2 + $0x1b8] sm:$0xff] %v1195
        %1292 = vst [vmem:[#allocation2 + $0x1c0] sm:$0xff] %v1196
        %1293 = vst [vmem:[#allocation2 + $0x1c8] sm:$0xff] %v1197
        %1294 = vst [vmem:[#allocation2 + $0x1d0] sm:$0xff] %v1198
        %1295 = vst [vmem:[#allocation2 + $0x1d8] sm:$0xff] %v1199
        %1296 = vst [vmem:[#allocation2 + $0x1e0] sm:$0xff] %v1200
        %1297 = vst [vmem:[#allocation2 + $0x1e8] sm:$0xff] %v1201
        %1298 = vst [vmem:[#allocation2 + $0x1f0] sm:$0xff] %v1202
        %1299 = vst [vmem:[#allocation2 + $0x1f8] sm:$0xff] %v1203
        %1300 = vst [vmem:[#allocation2 + $0x200] sm:$0xff] %v1204
        %1301 = vst [vmem:[#allocation2 + $0x208] sm:$0xff] %v1205
        %1302 = vst [vmem:[#allocation2 + $0x210] sm:$0xff] %v1206
        %1303 = vst [vmem:[#allocation2 + $0x218] sm:$0xff] %v1207
        %1304 = vst [vmem:[#allocation2 + $0x220] sm:$0xff] %v1208
        %1305 = vst [vmem:[#allocation2 + $0x228] sm:$0xff] %v1209
        %1306 = vst [vmem:[#allocation2 + $0x230] sm:$0xff] %v1210
        %1307 = vst [vmem:[#allocation2 + $0x238] sm:$0xff] %v1211
        %1308 = vst [vmem:[#allocation2 + $0x240] sm:$0xff] %v1212
        %1309 = vst [vmem:[#allocation2 + $0x248] sm:$0xff] %v1213
        %1310 = vst [vmem:[#allocation2 + $0x250] sm:$0xff] %v1214
        %1311 = vst [vmem:[#allocation2 + $0x258] sm:$0xff] %v1215
        %1312 = vst [vmem:[#allocation2 + $0x260] sm:$0xff] %v1216
        %1313 = vst [vmem:[#allocation2 + $0x268] sm:$0xff] %v1217
        %1314 = vst [vmem:[#allocation2 + $0x270] sm:$0xff] %v1218
        %1315 = vst [vmem:[#allocation2 + $0x278] sm:$0xff] %v1219
        %1316 = vst [vmem:[#allocation2 + $0x280] sm:$0xff] %v1220
        %1317 = vst [vmem:[#allocation2 + $0x288] sm:$0xff] %v1221
        %1318 = vst [vmem:[#allocation2 + $0x290] sm:$0xff] %v1222
        %1319 = vst [vmem:[#allocation2 + $0x298] sm:$0xff] %v1223
        %1320 = vst [vmem:[#allocation2 + $0x2a0] sm:$0xff] %v1224
        %1321 = vst [vmem:[#allocation2 + $0x2a8] sm:$0xff] %v1225
        %1322 = vst [vmem:[#allocation2 + $0x2b0] sm:$0xff] %v1226
        %1323 = vst [vmem:[#allocation2 + $0x2b8] sm:$0xff] %v1227
        %1324 = vst [vmem:[#allocation2 + $0x2c0] sm:$0xff] %v1228
        %1325 = vst [vmem:[#allocation2 + $0x2c8] sm:$0xff] %v1229
        %1326 = vst [vmem:[#allocation2 + $0x2d0] sm:$0xff] %v1230
        %1327 = vst [vmem:[#allocation2 + $0x2d8] sm:$0xff] %v1231
        %1328 = vst [vmem:[#allocation2 + $0x2e0] sm:$0xff] %v1232
        %1329 = vst [vmem:[#allocation2 + $0x2e8] sm:$0xff] %v1233
        %1330 = vst [vmem:[#allocation2 + $0x2f0] sm:$0xff] %v1234
        %1331 = vst [vmem:[#allocation2 + $0x2f8] sm:$0xff] %v1235
        // Predicated region
        $region49: #{tpu_custom_call.1} parent=31 // pred_check
          %p1332 = pneg %p302
        $region50: #{tpu_custom_call.1} parent=31 // pred_check_branch
          %1334 = sbr.rel (%p1332) target = $region52
        $region51: #{tpu_custom_call.1} parent=31 // pred_region
          %v1335 = vld [vmem:[#allocation2] sm:$0xff]
          %v1336 = vld [vmem:[#allocation2 + $0x8] sm:$0xff]
          %v1337 = vld [vmem:[#allocation2 + $0x10] sm:$0xff]
          %v1338 = vld [vmem:[#allocation2 + $0x18] sm:$0xff]
          %v1339 = vld [vmem:[#allocation2 + $0x20] sm:$0xff]
          %v1340 = vld [vmem:[#allocation2 + $0x28] sm:$0xff]
          %v1341 = vld [vmem:[#allocation2 + $0x30] sm:$0xff]
          %v1342 = vld [vmem:[#allocation2 + $0x38] sm:$0xff]
          %v1343 = vld [vmem:[#allocation2 + $0x40] sm:$0xff]
          %v1344 = vld [vmem:[#allocation2 + $0x48] sm:$0xff]
          %v1345 = vld [vmem:[#allocation2 + $0x50] sm:$0xff]
          %v1346 = vld [vmem:[#allocation2 + $0x58] sm:$0xff]
          %v1347 = vld [vmem:[#allocation2 + $0x60] sm:$0xff]
          %v1348 = vld [vmem:[#allocation2 + $0x68] sm:$0xff]
          %v1349 = vld [vmem:[#allocation2 + $0x70] sm:$0xff]
          %v1350 = vld [vmem:[#allocation2 + $0x78] sm:$0xff]
          %v1351 = vld [vmem:[#allocation2 + $0x80] sm:$0xff]
          %v1352 = vld [vmem:[#allocation2 + $0x88] sm:$0xff]
          %v1353 = vld [vmem:[#allocation2 + $0x90] sm:$0xff]
          %v1354 = vld [vmem:[#allocation2 + $0x98] sm:$0xff]
          %v1355 = vld [vmem:[#allocation2 + $0xa0] sm:$0xff]
          %v1356 = vld [vmem:[#allocation2 + $0xa8] sm:$0xff]
          %v1357 = vld [vmem:[#allocation2 + $0xb0] sm:$0xff]
          %v1358 = vld [vmem:[#allocation2 + $0xb8] sm:$0xff]
          %v1359 = vld [vmem:[#allocation2 + $0xc0] sm:$0xff]
          %v1360 = vld [vmem:[#allocation2 + $0xc8] sm:$0xff]
          %v1361 = vld [vmem:[#allocation2 + $0xd0] sm:$0xff]
          %v1362 = vld [vmem:[#allocation2 + $0xd8] sm:$0xff]
          %v1363 = vld [vmem:[#allocation2 + $0xe0] sm:$0xff]
          %v1364 = vld [vmem:[#allocation2 + $0xe8] sm:$0xff]
          %v1365 = vld [vmem:[#allocation2 + $0xf0] sm:$0xff]
          %v1366 = vld [vmem:[#allocation2 + $0xf8] sm:$0xff]
          %v1367 = vld [vmem:[#allocation2 + $0x100] sm:$0xff]
          %v1368 = vld [vmem:[#allocation2 + $0x108] sm:$0xff]
          %v1369 = vld [vmem:[#allocation2 + $0x110] sm:$0xff]
          %v1370 = vld [vmem:[#allocation2 + $0x118] sm:$0xff]
          %v1371 = vld [vmem:[#allocation2 + $0x120] sm:$0xff]
          %v1372 = vld [vmem:[#allocation2 + $0x128] sm:$0xff]
          %v1373 = vld [vmem:[#allocation2 + $0x130] sm:$0xff]
          %v1374 = vld [vmem:[#allocation2 + $0x138] sm:$0xff]
          %v1375 = vld [vmem:[#allocation2 + $0x140] sm:$0xff]
          %v1376 = vld [vmem:[#allocation2 + $0x148] sm:$0xff]
          %v1377 = vld [vmem:[#allocation2 + $0x150] sm:$0xff]
          %v1378 = vld [vmem:[#allocation2 + $0x158] sm:$0xff]
          %v1379 = vld [vmem:[#allocation2 + $0x160] sm:$0xff]
          %v1380 = vld [vmem:[#allocation2 + $0x168] sm:$0xff]
          %v1381 = vld [vmem:[#allocation2 + $0x170] sm:$0xff]
          %v1382 = vld [vmem:[#allocation2 + $0x178] sm:$0xff]
          %v1383 = vld [vmem:[#allocation2 + $0x180] sm:$0xff]
          %v1384 = vld [vmem:[#allocation2 + $0x188] sm:$0xff]
          %v1385 = vld [vmem:[#allocation2 + $0x190] sm:$0xff]
          %v1386 = vld [vmem:[#allocation2 + $0x198] sm:$0xff]
          %v1387 = vld [vmem:[#allocation2 + $0x1a0] sm:$0xff]
          %v1388 = vld [vmem:[#allocation2 + $0x1a8] sm:$0xff]
          %v1389 = vld [vmem:[#allocation2 + $0x1b0] sm:$0xff]
          %v1390 = vld [vmem:[#allocation2 + $0x1b8] sm:$0xff]
          %v1391 = vld [vmem:[#allocation2 + $0x1c0] sm:$0xff]
          %v1392 = vld [vmem:[#allocation2 + $0x1c8] sm:$0xff]
          %v1393 = vld [vmem:[#allocation2 + $0x1d0] sm:$0xff]
          %v1394 = vld [vmem:[#allocation2 + $0x1d8] sm:$0xff]
          %v1395 = vld [vmem:[#allocation2 + $0x1e0] sm:$0xff]
          %v1396 = vld [vmem:[#allocation2 + $0x1e8] sm:$0xff]
          %v1397 = vld [vmem:[#allocation2 + $0x1f0] sm:$0xff]
          %v1398 = vld [vmem:[#allocation2 + $0x1f8] sm:$0xff]
          %v1399 = vld [vmem:[#allocation2 + $0x200] sm:$0xff]
          %v1400 = vld [vmem:[#allocation2 + $0x208] sm:$0xff]
          %v1401 = vld [vmem:[#allocation2 + $0x210] sm:$0xff]
          %v1402 = vld [vmem:[#allocation2 + $0x218] sm:$0xff]
          %v1403 = vld [vmem:[#allocation2 + $0x220] sm:$0xff]
          %v1404 = vld [vmem:[#allocation2 + $0x228] sm:$0xff]
          %v1405 = vld [vmem:[#allocation2 + $0x230] sm:$0xff]
          %v1406 = vld [vmem:[#allocation2 + $0x238] sm:$0xff]
          %v1407 = vld [vmem:[#allocation2 + $0x240] sm:$0xff]
          %v1408 = vld [vmem:[#allocation2 + $0x248] sm:$0xff]
          %v1409 = vld [vmem:[#allocation2 + $0x250] sm:$0xff]
          %v1410 = vld [vmem:[#allocation2 + $0x258] sm:$0xff]
          %v1411 = vld [vmem:[#allocation2 + $0x260] sm:$0xff]
          %v1412 = vld [vmem:[#allocation2 + $0x268] sm:$0xff]
          %v1413 = vld [vmem:[#allocation2 + $0x270] sm:$0xff]
          %v1414 = vld [vmem:[#allocation2 + $0x278] sm:$0xff]
          %v1415 = vld [vmem:[#allocation2 + $0x280] sm:$0xff]
          %v1416 = vld [vmem:[#allocation2 + $0x288] sm:$0xff]
          %v1417 = vld [vmem:[#allocation2 + $0x290] sm:$0xff]
          %v1418 = vld [vmem:[#allocation2 + $0x298] sm:$0xff]
          %v1419 = vld [vmem:[#allocation2 + $0x2a0] sm:$0xff]
          %v1420 = vld [vmem:[#allocation2 + $0x2a8] sm:$0xff]
          %v1421 = vld [vmem:[#allocation2 + $0x2b0] sm:$0xff]
          %v1422 = vld [vmem:[#allocation2 + $0x2b8] sm:$0xff]
          %v1423 = vld [vmem:[#allocation2 + $0x2c0] sm:$0xff]
          %v1424 = vld [vmem:[#allocation2 + $0x2c8] sm:$0xff]
          %v1425 = vld [vmem:[#allocation2 + $0x2d0] sm:$0xff]
          %v1426 = vld [vmem:[#allocation2 + $0x2d8] sm:$0xff]
          %v1427 = vld [vmem:[#allocation2 + $0x2e0] sm:$0xff]
          %v1428 = vld [vmem:[#allocation2 + $0x2e8] sm:$0xff]
          %v1429 = vld [vmem:[#allocation2 + $0x2f0] sm:$0xff]
          %v1430 = vld [vmem:[#allocation2 + $0x2f8] sm:$0xff]
          %v1431 = vld [vmem:[%s262] sm:$0x7]
          %v1433 = vlaneseq
          %v1434 = vshrl.u32 %v1433, 7
          %v1435 = vsub.s32 0, %v1434
          %v1436 = vrot.slane %v1431, %v1435
          %v1437 = vlaneseq
          %v1438 = vshrl.u32 %v1437, 7
          %v1439 = vsub.s32 1, %v1438
          %v1440 = vrot.slane %v1431, %v1439
          %v1441 = vlaneseq
          %v1442 = vshrl.u32 %v1441, 7
          %v1443 = vsub.s32 2, %v1442
          %v1444 = vrot.slane %v1431, %v1443
          %v1448 = vadd.f32 %v1335, %v1436
          %v1449 = vadd.f32 %v1336, %v1440
          %v1450 = vadd.f32 %v1337, %v1444
          %v1451 = vadd.f32 %v1338, %v1436
          %v1452 = vadd.f32 %v1339, %v1440
          %v1453 = vadd.f32 %v1340, %v1444
          %v1454 = vadd.f32 %v1341, %v1436
          %v1455 = vadd.f32 %v1342, %v1440
          %v1456 = vadd.f32 %v1343, %v1444
          %v1457 = vadd.f32 %v1344, %v1436
          %v1458 = vadd.f32 %v1345, %v1440
          %v1459 = vadd.f32 %v1346, %v1444
          %v1460 = vadd.f32 %v1347, %v1436
          %v1461 = vadd.f32 %v1348, %v1440
          %v1462 = vadd.f32 %v1349, %v1444
          %v1463 = vadd.f32 %v1350, %v1436
          %v1464 = vadd.f32 %v1351, %v1440
          %v1465 = vadd.f32 %v1352, %v1444
          %v1466 = vadd.f32 %v1353, %v1436
          %v1467 = vadd.f32 %v1354, %v1440
          %v1468 = vadd.f32 %v1355, %v1444
          %v1469 = vadd.f32 %v1356, %v1436
          %v1470 = vadd.f32 %v1357, %v1440
          %v1471 = vadd.f32 %v1358, %v1444
          %v1472 = vadd.f32 %v1359, %v1436
          %v1473 = vadd.f32 %v1360, %v1440
          %v1474 = vadd.f32 %v1361, %v1444
          %v1475 = vadd.f32 %v1362, %v1436
          %v1476 = vadd.f32 %v1363, %v1440
          %v1477 = vadd.f32 %v1364, %v1444
          %v1478 = vadd.f32 %v1365, %v1436
          %v1479 = vadd.f32 %v1366, %v1440
          %v1480 = vadd.f32 %v1367, %v1444
          %v1481 = vadd.f32 %v1368, %v1436
          %v1482 = vadd.f32 %v1369, %v1440
          %v1483 = vadd.f32 %v1370, %v1444
          %v1484 = vadd.f32 %v1371, %v1436
          %v1485 = vadd.f32 %v1372, %v1440
          %v1486 = vadd.f32 %v1373, %v1444
          %v1487 = vadd.f32 %v1374, %v1436
          %v1488 = vadd.f32 %v1375, %v1440
          %v1489 = vadd.f32 %v1376, %v1444
          %v1490 = vadd.f32 %v1377, %v1436
          %v1491 = vadd.f32 %v1378, %v1440
          %v1492 = vadd.f32 %v1379, %v1444
          %v1493 = vadd.f32 %v1380, %v1436
          %v1494 = vadd.f32 %v1381, %v1440
          %v1495 = vadd.f32 %v1382, %v1444
          %v1496 = vadd.f32 %v1383, %v1436
          %v1497 = vadd.f32 %v1384, %v1440
          %v1498 = vadd.f32 %v1385, %v1444
          %v1499 = vadd.f32 %v1386, %v1436
          %v1500 = vadd.f32 %v1387, %v1440
          %v1501 = vadd.f32 %v1388, %v1444
          %v1502 = vadd.f32 %v1389, %v1436
          %v1503 = vadd.f32 %v1390, %v1440
          %v1504 = vadd.f32 %v1391, %v1444
          %v1505 = vadd.f32 %v1392, %v1436
          %v1506 = vadd.f32 %v1393, %v1440
          %v1507 = vadd.f32 %v1394, %v1444
          %v1508 = vadd.f32 %v1395, %v1436
          %v1509 = vadd.f32 %v1396, %v1440
          %v1510 = vadd.f32 %v1397, %v1444
          %v1511 = vadd.f32 %v1398, %v1436
          %v1512 = vadd.f32 %v1399, %v1440
          %v1513 = vadd.f32 %v1400, %v1444
          %v1514 = vadd.f32 %v1401, %v1436
          %v1515 = vadd.f32 %v1402, %v1440
          %v1516 = vadd.f32 %v1403, %v1444
          %v1517 = vadd.f32 %v1404, %v1436
          %v1518 = vadd.f32 %v1405, %v1440
          %v1519 = vadd.f32 %v1406, %v1444
          %v1520 = vadd.f32 %v1407, %v1436
          %v1521 = vadd.f32 %v1408, %v1440
          %v1522 = vadd.f32 %v1409, %v1444
          %v1523 = vadd.f32 %v1410, %v1436
          %v1524 = vadd.f32 %v1411, %v1440
          %v1525 = vadd.f32 %v1412, %v1444
          %v1526 = vadd.f32 %v1413, %v1436
          %v1527 = vadd.f32 %v1414, %v1440
          %v1528 = vadd.f32 %v1415, %v1444
          %v1529 = vadd.f32 %v1416, %v1436
          %v1530 = vadd.f32 %v1417, %v1440
          %v1531 = vadd.f32 %v1418, %v1444
          %v1532 = vadd.f32 %v1419, %v1436
          %v1533 = vadd.f32 %v1420, %v1440
          %v1534 = vadd.f32 %v1421, %v1444
          %v1535 = vadd.f32 %v1422, %v1436
          %v1536 = vadd.f32 %v1423, %v1440
          %v1537 = vadd.f32 %v1424, %v1444
          %v1538 = vadd.f32 %v1425, %v1436
          %v1539 = vadd.f32 %v1426, %v1440
          %v1540 = vadd.f32 %v1427, %v1444
          %v1541 = vadd.f32 %v1428, %v1436
          %v1542 = vadd.f32 %v1429, %v1440
          %v1543 = vadd.f32 %v1430, %v1444
          %1544 = vst [vmem:[%s294] sm:$0xff] %v1448
          %1545 = vst [vmem:[%s294 + $0x8] sm:$0xff] %v1449
          %1546 = vst [vmem:[%s294 + $0x10] sm:$0xff] %v1450
          %1547 = vst [vmem:[%s294 + $0x18] sm:$0xff] %v1451
          %1548 = vst [vmem:[%s294 + $0x20] sm:$0xff] %v1452
          %1549 = vst [vmem:[%s294 + $0x28] sm:$0xff] %v1453
          %1550 = vst [vmem:[%s294 + $0x30] sm:$0xff] %v1454
          %1551 = vst [vmem:[%s294 + $0x38] sm:$0xff] %v1455
          %1552 = vst [vmem:[%s294 + $0x40] sm:$0xff] %v1456
          %1553 = vst [vmem:[%s294 + $0x48] sm:$0xff] %v1457
          %1554 = vst [vmem:[%s294 + $0x50] sm:$0xff] %v1458
          %1555 = vst [vmem:[%s294 + $0x58] sm:$0xff] %v1459
          %1556 = vst [vmem:[%s294 + $0x60] sm:$0xff] %v1460
          %1557 = vst [vmem:[%s294 + $0x68] sm:$0xff] %v1461
          %1558 = vst [vmem:[%s294 + $0x70] sm:$0xff] %v1462
          %1559 = vst [vmem:[%s294 + $0x78] sm:$0xff] %v1463
          %1560 = vst [vmem:[%s294 + $0x80] sm:$0xff] %v1464
          %1561 = vst [vmem:[%s294 + $0x88] sm:$0xff] %v1465
          %1562 = vst [vmem:[%s294 + $0x90] sm:$0xff] %v1466
          %1563 = vst [vmem:[%s294 + $0x98] sm:$0xff] %v1467
          %1564 = vst [vmem:[%s294 + $0xa0] sm:$0xff] %v1468
          %1565 = vst [vmem:[%s294 + $0xa8] sm:$0xff] %v1469
          %1566 = vst [vmem:[%s294 + $0xb0] sm:$0xff] %v1470
          %1567 = vst [vmem:[%s294 + $0xb8] sm:$0xff] %v1471
          %1568 = vst [vmem:[%s294 + $0xc0] sm:$0xff] %v1472
          %1569 = vst [vmem:[%s294 + $0xc8] sm:$0xff] %v1473
          %1570 = vst [vmem:[%s294 + $0xd0] sm:$0xff] %v1474
          %1571 = vst [vmem:[%s294 + $0xd8] sm:$0xff] %v1475
          %1572 = vst [vmem:[%s294 + $0xe0] sm:$0xff] %v1476
          %1573 = vst [vmem:[%s294 + $0xe8] sm:$0xff] %v1477
          %1574 = vst [vmem:[%s294 + $0xf0] sm:$0xff] %v1478
          %1575 = vst [vmem:[%s294 + $0xf8] sm:$0xff] %v1479
          %1576 = vst [vmem:[%s294 + $0x100] sm:$0xff] %v1480
          %1577 = vst [vmem:[%s294 + $0x108] sm:$0xff] %v1481
          %1578 = vst [vmem:[%s294 + $0x110] sm:$0xff] %v1482
          %1579 = vst [vmem:[%s294 + $0x118] sm:$0xff] %v1483
          %1580 = vst [vmem:[%s294 + $0x120] sm:$0xff] %v1484
          %1581 = vst [vmem:[%s294 + $0x128] sm:$0xff] %v1485
          %1582 = vst [vmem:[%s294 + $0x130] sm:$0xff] %v1486
          %1583 = vst [vmem:[%s294 + $0x138] sm:$0xff] %v1487
          %1584 = vst [vmem:[%s294 + $0x140] sm:$0xff] %v1488
          %1585 = vst [vmem:[%s294 + $0x148] sm:$0xff] %v1489
          %1586 = vst [vmem:[%s294 + $0x150] sm:$0xff] %v1490
          %1587 = vst [vmem:[%s294 + $0x158] sm:$0xff] %v1491
          %1588 = vst [vmem:[%s294 + $0x160] sm:$0xff] %v1492
          %1589 = vst [vmem:[%s294 + $0x168] sm:$0xff] %v1493
          %1590 = vst [vmem:[%s294 + $0x170] sm:$0xff] %v1494
          %1591 = vst [vmem:[%s294 + $0x178] sm:$0xff] %v1495
          %1592 = vst [vmem:[%s294 + $0x180] sm:$0xff] %v1496
          %1593 = vst [vmem:[%s294 + $0x188] sm:$0xff] %v1497
          %1594 = vst [vmem:[%s294 + $0x190] sm:$0xff] %v1498
          %1595 = vst [vmem:[%s294 + $0x198] sm:$0xff] %v1499
          %1596 = vst [vmem:[%s294 + $0x1a0] sm:$0xff] %v1500
          %1597 = vst [vmem:[%s294 + $0x1a8] sm:$0xff] %v1501
          %1598 = vst [vmem:[%s294 + $0x1b0] sm:$0xff] %v1502
          %1599 = vst [vmem:[%s294 + $0x1b8] sm:$0xff] %v1503
          %1600 = vst [vmem:[%s294 + $0x1c0] sm:$0xff] %v1504
          %1601 = vst [vmem:[%s294 + $0x1c8] sm:$0xff] %v1505
          %1602 = vst [vmem:[%s294 + $0x1d0] sm:$0xff] %v1506
          %1603 = vst [vmem:[%s294 + $0x1d8] sm:$0xff] %v1507
          %1604 = vst [vmem:[%s294 + $0x1e0] sm:$0xff] %v1508
          %1605 = vst [vmem:[%s294 + $0x1e8] sm:$0xff] %v1509
          %1606 = vst [vmem:[%s294 + $0x1f0] sm:$0xff] %v1510
          %1607 = vst [vmem:[%s294 + $0x1f8] sm:$0xff] %v1511
          %1608 = vst [vmem:[%s294 + $0x200] sm:$0xff] %v1512
          %1609 = vst [vmem:[%s294 + $0x208] sm:$0xff] %v1513
          %1610 = vst [vmem:[%s294 + $0x210] sm:$0xff] %v1514
          %1611 = vst [vmem:[%s294 + $0x218] sm:$0xff] %v1515
          %1612 = vst [vmem:[%s294 + $0x220] sm:$0xff] %v1516
          %1613 = vst [vmem:[%s294 + $0x228] sm:$0xff] %v1517
          %1614 = vst [vmem:[%s294 + $0x230] sm:$0xff] %v1518
          %1615 = vst [vmem:[%s294 + $0x238] sm:$0xff] %v1519
          %1616 = vst [vmem:[%s294 + $0x240] sm:$0xff] %v1520
          %1617 = vst [vmem:[%s294 + $0x248] sm:$0xff] %v1521
          %1618 = vst [vmem:[%s294 + $0x250] sm:$0xff] %v1522
          %1619 = vst [vmem:[%s294 + $0x258] sm:$0xff] %v1523
          %1620 = vst [vmem:[%s294 + $0x260] sm:$0xff] %v1524
          %1621 = vst [vmem:[%s294 + $0x268] sm:$0xff] %v1525
          %1622 = vst [vmem:[%s294 + $0x270] sm:$0xff] %v1526
          %1623 = vst [vmem:[%s294 + $0x278] sm:$0xff] %v1527
          %1624 = vst [vmem:[%s294 + $0x280] sm:$0xff] %v1528
          %1625 = vst [vmem:[%s294 + $0x288] sm:$0xff] %v1529
          %1626 = vst [vmem:[%s294 + $0x290] sm:$0xff] %v1530
          %1627 = vst [vmem:[%s294 + $0x298] sm:$0xff] %v1531
          %1628 = vst [vmem:[%s294 + $0x2a0] sm:$0xff] %v1532
          %1629 = vst [vmem:[%s294 + $0x2a8] sm:$0xff] %v1533
          %1630 = vst [vmem:[%s294 + $0x2b0] sm:$0xff] %v1534
          %1631 = vst [vmem:[%s294 + $0x2b8] sm:$0xff] %v1535
          %1632 = vst [vmem:[%s294 + $0x2c0] sm:$0xff] %v1536
          %1633 = vst [vmem:[%s294 + $0x2c8] sm:$0xff] %v1537
          %1634 = vst [vmem:[%s294 + $0x2d0] sm:$0xff] %v1538
          %1635 = vst [vmem:[%s294 + $0x2d8] sm:$0xff] %v1539
          %1636 = vst [vmem:[%s294 + $0x2e0] sm:$0xff] %v1540
          %1637 = vst [vmem:[%s294 + $0x2e8] sm:$0xff] %v1541
          %1638 = vst [vmem:[%s294 + $0x2f0] sm:$0xff] %v1542
          %1639 = vst [vmem:[%s294 + $0x2f8] sm:$0xff] %v1543
        $region52: #{tpu_custom_call.1} parent=31 // pred_fallthru
          _
        %s1640 = sand.u32 %s134, 1
        %s1641 = scalar_lea.sflag [#allocation5], %s1640
        %s1642 = sand.u32 %s134, 1
        %s1643 = smul.addr %s1642, 768
        %s1644 = scalar_lea.vmem [#allocation9], %s1643
        // Predicated region
        $region53: #{tpu_custom_call.1} parent=31 // pred_check
          %p1645 = pneg %p144
        $region54: #{tpu_custom_call.1} parent=31 // pred_check_branch
          %1647 = sbr.rel (%p1645) target = $region56
        $region55: #{tpu_custom_call.1} parent=31 // pred_region
          %s1648 = smul.u32 32, %s28
          %s1649 = smul.u32 3, %s29
          %s1651 = ssub.s32 12288, 12288
          %1652 = vsyncadd %s1641, %s1651
          %s1653 = smul.addr %s1648, 6
          %s1654 = sadd.s32 %s1649, %s1653
          %s1655 = smul.addr %s1654, 128
          %s1656 = scalar_lea.hbm %s3, %s1655
          %s1657 = sshll.u32 %s1644, 4
          %s1658 = int_to_ptr.vmem [resolvable:$true] %s1657
          %1663 = dma.vmem_to_hbm [thread:$0]  %s1658, 12288, %s1656, %s1641, 384, 768, 24
        $region56: #{tpu_custom_call.1} parent=31 // pred_fallthru
          _
      $region32: #{tpu_custom_call.1} parent=5 // pred_fallthru
        _
      %p1664 = scmp.le.s32.totalorder 2, %s18
      // Predicated region
      $region57: #{tpu_custom_call.1} parent=5 // pred_check
        %p1665 = pneg %p1664
      $region58: #{tpu_custom_call.1} parent=5 // pred_check_branch
        %1667 = sbr.rel (%p1665) target = $region60
      $region59: #{tpu_custom_call.1} parent=5 // pred_region
        %s1668 = ssub.s32 %s18, 2
        // Predicated region
        $region61: #{tpu_custom_call.1} parent=59 // pred_check
          %p1669 = pneg %p150
        $region62: #{tpu_custom_call.1} parent=59 // pred_check_branch
          %1671 = sbr.rel (%p1669) target = $region64
        $region63: #{tpu_custom_call.1} parent=59 // pred_region
          %s1672 = sand.u32 %s135, 1
          %s1673 = scalar_lea.sflag [#allocation5], %s1672
          %s1674 = sand.u32 %s135, 1
          %s1675 = smul.addr %s1674, 768
          %s1676 = scalar_lea.vmem [#allocation9], %s1675
          %1677 = dma.done %s1673, 12288
        $region64: #{tpu_custom_call.1} parent=59 // pred_fallthru
          _
      $region60: #{tpu_custom_call.1} parent=5 // pred_fallthru
        _
    $region6: #{tpu_custom_call.1} parent=1 // loop_footer
      %s22 = sadd.s32 1, %s18
    $region7: #{tpu_custom_call.1} parent=1 // loop_footer_branch
      %17 = sbr.rel target = $region3
    $region8: #{tpu_custom_call.1} parent=1 // loop_exit
      _
    %1678 = vsyncpa [#allocation4], 1
    %s1679 = scalar_lea.sflag [#allocation4], 1
    %1680 = vsyncpa %s1679, 1
    %1681 = vsyncpa [#allocation7], 1
    %s1682 = scalar_lea.sflag [#allocation7], 1
    %1683 = vsyncpa %s1682, 1
    %1684 = vsyncpa [#allocation5], 1
    %s1685 = scalar_lea.sflag [#allocation5], 1
    %1686 = vsyncpa %s1685, 1

</llo_original>
